<compile_context>
chip_gen: v7x
topology: tpu7x:2x2x1
jax: 0.10.0
libtpu: 0.0.40
codegen_flags: <defaults>
</compile_context>

<pallas_src>
import functools

import jax
import jax.numpy as jnp
from jax.experimental import pallas as pl
from jax.experimental.pallas import tpu as pltpu

_CHAN_ALIGN = 16                       # f32 (8,128) and bf16 (16,128) sublane granule
_LANE_ALIGN = 128                      # lane granule for the flattened-spatial axis
_PATCH_BYTES_LIMIT = 2 * 1024 * 1024   # above this, use per-tap MXU accumulation
_GROUP_VMEM_BUDGET = 8 * 1024 * 1024   # per-step image-block budget when choosing G


# ----------------------------------------------------------------------------- helpers
def _round_up(n, m):
    return ((n + m - 1) // m) * m


def _choose_group(B, cpi, cpo, HWp, itemsize):
    """Images per grid step: largest divisor of B under the VMEM budget, keeping
    at least 2 grid steps (megacore on v7x) whenever B >= 2."""
    per_img = 2 * (cpi + cpo) * HWp * itemsize * 2   # double-buffered in+out blocks
    cap = max(1, min(B, _GROUP_VMEM_BUDGET // max(per_img, 1)))
    if B >= 2:
        cap = min(cap, B // 2)
    cap = max(cap, 1)
    g = 1
    for d in range(1, cap + 1):
        if B % d == 0:
            g = d
    return g


def _vmem_limit_bytes(estimate):
    cap = 64 * 1024 * 1024
    try:
        cap = int(getattr(pltpu.get_tpu_info(), "vmem_capacity_bytes", cap))
    except Exception:
        pass
    want = max(32 * 1024 * 1024, 4 * int(estimate))
    return int(min(want, max(cap - 8 * 1024 * 1024, 16 * 1024 * 1024)))


def _pack_weight(w, cpo, cpi, dtype, per_tap):
    """(Cout, Cin, 3, 3) torch-layout conv weight ->
       per_tap: (9, cpo, cpi)  (leading-axis tap slices, no lane slicing in-kernel)
       concat : (cpo, 9*cpi)   (columns tap-major, channel inner, matching im2col)."""
    cout, cin = w.shape[0], w.shape[1]
    wt = jnp.transpose(w, (2, 3, 0, 1))                                  # (3,3,Cout,Cin)
    wt = jnp.pad(wt, ((0, 0), (0, 0), (0, cpo - cout), (0, cpi - cin)))
    wt = wt.reshape(9, cpo, cpi)
    if per_tap:
        return wt.astype(dtype)
    return jnp.transpose(wt, (1, 0, 2)).reshape(cpo, 9 * cpi).astype(dtype)


def _bn_scale_shift(s1, s2, bias, gamma, beta, n, eps=1e-5):
    """Fold batch stats + affine params into y*scale + shift (all f32).

    s1/s2 are partial sums of the *pre-bias* conv output (bias-centered stats:
    variance is shift-invariant, mean gets the bias added back here)."""
    m_c = jnp.sum(s1, axis=(0, 2)) / n                       # E[y] - bias
    var = jnp.maximum(jnp.sum(s2, axis=(0, 2)) / n - m_c * m_c, 0.0)
    mean = m_c + bias
    scale = gamma * jax.lax.rsqrt(var + eps)
    shift = beta - mean * scale
    return (scale.reshape(-1, 1).astype(jnp.float32),
            shift.reshape(-1, 1).astype(jnp.float32))


# ----------------------------------------------------------------------------- conv core
def _conv3x3_tile(x, w, W, HW, per_tap):
    """3x3 / stride-1 / pad-1 conv of one image tile.

    x: (C, HWp) -- channels on sublanes, flattened spatial on lanes (HWp >= HW).
    w: (9, cpo, C) if per_tap else (cpo, 9*C).
    Returns the pre-bias f32 accumulator (cpo, HWp).  Taps are lane rolls (XLU)
    plus boundary masks (VPU); no padded VMEM scratch needed.
    """
    C, HWp = x.shape
    pos = jax.lax.broadcasted_iota(jnp.int32, (1, HWp), 1)   # flat spatial index
    col = pos % W
    zero = jnp.zeros_like(x)

    def tap(ky, kx):
        d = (ky - 1) * W + (kx - 1)                          # flat offset of source pixel
        t = x if d == 0 else pltpu.roll(x, shift=(-d) % HWp, axis=1)
        conds = []
        if ky == 0:
            conds.append(pos >= W)                           # source row h-1 >= 0
        elif ky == 2:
            conds.append(pos < HW - W)                       # source row h+1 <= H-1
        if kx == 0:
            conds.append(col >= 1)                           # source col w-1 >= 0
        elif kx == 2:
            conds.append(col < W - 1)                        # source col w+1 <= W-1
        if conds:
            valid = conds[0]
            for c in conds[1:]:
                valid = jnp.logical_and(valid, c)
            t = jnp.where(valid, t, zero)
        return t

    if per_tap:
        acc = jnp.zeros((w.shape[1], HWp), jnp.float32)
        for ky in range(3):
            for kx in range(3):
                acc = acc + jnp.dot(w[ky * 3 + kx], tap(ky, kx),
                                    preferred_element_type=jnp.float32)
        return acc

    patches = jnp.concatenate(
        [tap(ky, kx) for ky in range(3) for kx in range(3)], axis=0)      # (9*C, HWp)
    return jnp.dot(w, patches, preferred_element_type=jnp.float32)


# ----------------------------------------------------------------------------- kernels
def _conv1_kernel(x_ref, w_ref, b_ref, y_ref, s1_ref, s2_ref, *, W, HW, per_tap):
    """conv1 + bias for G images; emits per-step per-channel pre-bias sum / sumsq."""
    G, _, HWp = x_ref.shape
    lane_valid = None
    if HWp != HW:
        lane_valid = jax.lax.broadcasted_iota(jnp.int32, (1, HWp), 1) < HW
    s1 = jnp.zeros((s1_ref.shape[1], 1), jnp.float32)
    s2 = jnp.zeros_like(s1)
    w = w_ref[...]
    b = b_ref[...]
    for g in range(G):
        acc = _conv3x3_tile(x_ref[g], w, W, HW, per_tap)                  # f32, pre-bias
        if lane_valid is not None:
            acc = jnp.where(lane_valid, acc, 0.0)
        s1 += jnp.sum(acc, axis=1, keepdims=True)
        s2 += jnp.sum(acc * acc, axis=1, keepdims=True)
        y_ref[g] = (acc + b).astype(y_ref.dtype)                          # bf16 store
    s1_ref[0] = s1
    s2_ref[0] = s2


def _bn_relu_conv2_kernel(x_ref, sc_ref, sh_ref, w_ref, b_ref,
                          y_ref, s1_ref, s2_ref, *, W, HW, per_tap, compute_dtype):
    """bn1 + relu1 (f32) fused with conv2 + bias for G images; emits BN2 partials."""
    G, _, HWp = x_ref.shape
    lane_valid = None
    if HWp != HW:
        lane_valid = jax.lax.broadcasted_iota(jnp.int32, (1, HWp), 1) < HW
    s1 = jnp.zeros((s1_ref.shape[1], 1), jnp.float32)
    s2 = jnp.zeros_like(s1)
    sc = sc_ref[...]
    sh = sh_ref[...]
    w = w_ref[...]
    b = b_ref[...]
    for g in range(G):
        a = jnp.maximum(x_ref[g].astype(jnp.float32) * sc + sh, 0.0)      # f32 BN + ReLU
        acc = _conv3x3_tile(a.astype(compute_dtype), w, W, HW, per_tap)   # f32, pre-bias
        if lane_valid is not None:
            acc = jnp.where(lane_valid, acc, 0.0)
        s1 += jnp.sum(acc, axis=1, keepdims=True)
        s2 += jnp.sum(acc * acc, axis=1, keepdims=True)
        y_ref[g] = (acc + b).astype(y_ref.dtype)                          # bf16 store
    s1_ref[0] = s1
    s2_ref[0] = s2


# ----------------------------------------------------------------------------- wrapper
def downblock_forward(x_nchw, params, compute_dtype=jnp.bfloat16,
                      per_tap=None, images_per_step=None):
    """DownBlock forward. x_nchw: (B, Cin, H, W) f32 -> (B, Cout, H, W) f32.

    compute_dtype: MXU operand dtype AND the dtype of the y1/y2 HBM intermediates
    (bf16 recommended on all of v5e/v6e/v7x); accumulation and BN math stay in f32.
    per_tap: None = auto (per-tap MXU accumulation when the im2col patch matrix
    would exceed ~2 MiB), or force True/False.
    images_per_step: None = auto; otherwise must divide the batch size.
    """
    w1, b1, g1, be1, w2, b2, g2, be2 = params
    B, Cin, H, W = x_nchw.shape
    Cout = w1.shape[0]
    HW = H * W
    HWp = _round_up(HW, _LANE_ALIGN)
    cpi = _round_up(Cin, _CHAN_ALIGN)
    cpo = _round_up(Cout, _CHAN_ALIGN)
    n_stat = B * HW
    eps = 1e-5
    cd_bytes = jnp.dtype(compute_dtype).itemsize
    inter_dtype = compute_dtype                       # y1 / y2 HBM intermediates

    if per_tap is None:
        per_tap1 = 9 * cpi * HWp * cd_bytes > _PATCH_BYTES_LIMIT
        per_tap2 = 9 * cpo * HWp * cd_bytes > _PATCH_BYTES_LIMIT
    else:
        per_tap1 = per_tap2 = bool(per_tap)

    if images_per_step is not None:
        assert B % int(images_per_step) == 0, "images_per_step must divide batch"
        G = int(images_per_step)
    else:
        G = _choose_group(B, cpi, cpo, HWp, cd_bytes)
    n_groups = B // G

    # NCHW -> (B, C, H*W): pure reshape (no transpose); channels -> sublanes,
    # flattened spatial -> lanes.  Zero-pad channels and lanes to the granules.
    x = x_nchw.reshape(B, Cin, HW).astype(jnp.float32)
    x = jnp.pad(x, ((0, 0), (0, cpi - Cin), (0, HWp - HW))).astype(compute_dtype)

    a1 = _pack_weight(w1, cpo, cpi, compute_dtype, per_tap1)
    a2 = _pack_weight(w2, cpo, cpo, compute_dtype, per_tap2)
    b1p = jnp.pad(b1, (0, cpo - Cout)).astype(jnp.float32)
    b2p = jnp.pad(b2, (0, cpo - Cout)).astype(jnp.float32)
    b1c = b1p.reshape(cpo, 1)
    b2c = b2p.reshape(cpo, 1)
    g1p = jnp.pad(g1, (0, cpo - Cout), constant_values=1.0).astype(jnp.float32)
    g2p = jnp.pad(g2, (0, cpo - Cout), constant_values=1.0).astype(jnp.float32)
    be1p = jnp.pad(be1, (0, cpo - Cout)).astype(jnp.float32)
    be2p = jnp.pad(be2, (0, cpo - Cout)).astype(jnp.float32)

    # rough per-step VMEM footprint (double-buffered image blocks + resident weights
    # + patch/accumulator temps) -> explicit scoped-VMEM limit (matters on v5e/v7x).
    est = (2 * G * (cpi + cpo) * HWp * cd_bytes
           + 9 * (cpi + cpo) * cpo * cd_bytes
           + 9 * max(cpi, cpo) * HWp * cd_bytes
           + 3 * cpo * HWp * 4)
    cparams = pltpu.CompilerParams(dimension_semantics=("parallel",),
                                   vmem_limit_bytes=_vmem_limit_bytes(est))

    img_in = pl.BlockSpec((G, cpi, HWp), lambda g: (g, 0, 0))
    img_mid = pl.BlockSpec((G, cpo, HWp), lambda g: (g, 0, 0))
    vec = pl.BlockSpec((cpo, 1), lambda g: (0, 0))
    stat = pl.BlockSpec((1, cpo, 1), lambda g: (g, 0, 0))
    w1_spec = pl.BlockSpec(a1.shape, lambda g, _n=a1.ndim: (0,) * _n)
    w2_spec = pl.BlockSpec(a2.shape, lambda g, _n=a2.ndim: (0,) * _n)
    stat_shape = jax.ShapeDtypeStruct((n_groups, cpo, 1), jnp.float32)

    # ---- kernel 1: conv1 + bias (+ BN1 pre-bias partial sums) ----
    y1, s11, s12 = pl.pallas_call(
        functools.partial(_conv1_kernel, W=W, HW=HW, per_tap=per_tap1),
        grid=(n_groups,),
        in_specs=[img_in, w1_spec, vec],
        out_specs=(img_mid, stat, stat),
        out_shape=(jax.ShapeDtypeStruct((B, cpo, HWp), inter_dtype),
                   stat_shape, stat_shape),
        compiler_params=cparams,
    )(x, a1, b1c)

    scale1, shift1 = _bn_scale_shift(s11, s12, b1p, g1p, be1p, n_stat, eps)

    # ---- kernel 2: bn1 + relu1 + conv2 + bias (+ BN2 pre-bias partial sums) ----
    y2, s21, s22 = pl.pallas_call(
        functools.partial(_bn_relu_conv2_kernel, W=W, HW=HW, per_tap=per_tap2,
                          compute_dtype=compute_dtype),
        grid=(n_groups,),
        in_specs=[img_mid, vec, vec, w2_spec, vec],
        out_specs=(img_mid, stat, stat),
        out_shape=(jax.ShapeDtypeStruct((B, cpo, HWp), inter_dtype),
                   stat_shape, stat_shape),
        compiler_params=cparams,
    )(y1, scale1, shift1, a2, b2c)

    scale2, shift2 = _bn_scale_shift(s21, s22, b2p, g2p, be2p, n_stat, eps)

    # ---- bn2 + relu2 + channel/lane unpad: single fused XLA elementwise pass ----
    out = jnp.maximum(y2.astype(jnp.float32) * scale2[None] + shift2[None], 0.0)
    return out[:, :Cout, :HW].reshape(B, Cout, H, W)


# ----------------------------------------------------------------------------- reference
def _reference_forward(x_nchw, params):
    """Pure-JAX reference (NCHW conv + training-mode BN + ReLU), f32 HIGHEST precision."""
    w1, b1, g1, be1, w2, b2, g2, be2 = params
    eps = 1e-5

    def block(x, w, b, g, be):
        y = jax.lax.conv_general_dilated(
            x, w, window_strides=(1, 1), padding=((1, 1), (1, 1)),
            dimension_numbers=("NCHW", "OIHW", "NCHW"),
            precision=jax.lax.Precision.HIGHEST)
        y = y + b[None, :, None, None]
        m = jnp.mean(y, axis=(0, 2, 3), keepdims=True)
        v = jnp.mean((y - m) ** 2, axis=(0, 2, 3), keepdims=True)
        y = (y - m) * jax.lax.rsqrt(v + eps) * g[None, :, None, None] + be[None, :, None, None]
        return jnp.maximum(y, 0.0)

    y = block(x_nchw.astype(jnp.float32), w1, b1, g1, be1)
    return block(y, w2, b2, g2, be2)


def init_params(key, inplanes, planes):
    k1, k2, k3, k4 = jax.random.split(key, 4)
    w1 = 0.1 * jax.random.normal(k1, (planes, inplanes, 3, 3), jnp.float32)
    b1 = 0.1 * jax.random.normal(k2, (planes,), jnp.float32)
    w2 = 0.1 * jax.random.normal(k3, (planes, planes, 3, 3), jnp.float32)
    b2 = 0.1 * jax.random.normal(k4, (planes,), jnp.float32)
    # BatchNorm2d defaults: weight=1, bias=0
    g1 = jnp.ones((planes,), jnp.float32)
    be1 = jnp.zeros((planes,), jnp.float32)
    g2 = jnp.ones((planes,), jnp.float32)
    be2 = jnp.zeros((planes,), jnp.float32)
    return (w1, b1, g1, be1, w2, b2, g2, be2)


if __name__ == "__main__":
    B, Cin, Cout, H, W = 2, 4, 8, 16, 16
    key = jax.random.PRNGKey(0)
    kx, kp = jax.random.split(key)
    x = jax.random.normal(kx, (B, Cin, H, W), jnp.float32)
    params = init_params(kp, Cin, Cout)

    fwd = jax.jit(downblock_forward,
                  static_argnames=("compute_dtype", "per_tap", "images_per_step"))
    ref = _reference_forward(x, params)

    # f32 MXU-operand / f32-intermediate path.
    out_f32 = fwd(x, params, compute_dtype=jnp.float32)
    jax.block_until_ready(out_f32)
    assert out_f32.shape == (B, Cout, H, W)
    assert jnp.allclose(out_f32, ref, atol=2e-2, rtol=2e-2), "f32 path mismatch vs reference"

    # bf16 MXU operands + bf16 HBM intermediates (default fast path); BN math stays f32.
    out_bf16 = fwd(x, params)
    jax.block_until_ready(out_bf16)
    assert out_bf16.shape == (B, Cout, H, W)
    assert jnp.allclose(out_bf16, ref, atol=1e-1, rtol=1e-1), "bf16 path mismatch vs reference"

    # per-tap MXU accumulation + 2 images per grid step (exercises the large-channel
    # / v7x-friendly code path and the multi-image grouping).
    out_pt = fwd(x, params, per_tap=True, images_per_step=2)
    jax.block_until_ready(out_pt)
    assert out_pt.shape == (B, Cout, H, W)
    assert jnp.allclose(out_pt, ref, atol=1e-1, rtol=1e-1), "per-tap path mismatch vs reference"

    print("KERNEL_OK")
</pallas_src>

<mosaic_0001>
module attributes {stable_mosaic.version = 11 : i64} {
  func.func @_conv1_kernel(%arg0: i32, %arg1: memref<1x16x256xf32, #tpu.memory_space<vmem>>, %arg2: memref<16x144xf32, #tpu.memory_space<vmem>>, %arg3: memref<16x1xf32, #tpu.memory_space<vmem>>, %arg4: memref<1x16x256xf32, #tpu.memory_space<vmem>>, %arg5: memref<1x16x1xf32, #tpu.memory_space<vmem>>, %arg6: memref<1x16x1xf32, #tpu.memory_space<vmem>>) attributes {dimension_semantics = [#tpu.dimension_semantics<parallel>], iteration_bounds = array<i64: 2>, scalar_prefetch = 0 : i64, scratch_operands = 0 : i64, tpu.core_type = #tpu.core_type<tc>, window_params = [{transform_indices = @transform_0, window_bounds = array<i64: 1, 16, 256>}, {pipeline_mode = #tpu.pipeline_mode<synchronous>, transform_indices = @transform_1, window_bounds = array<i64: 16, 144>}, {pipeline_mode = #tpu.pipeline_mode<synchronous>, transform_indices = @transform_2, window_bounds = array<i64: 16, 1>}, {transform_indices = @transform_3, window_bounds = array<i64: 1, 16, 256>}, {transform_indices = @transform_4, window_bounds = array<i64: 1, 16, 1>}, {transform_indices = @transform_5, window_bounds = array<i64: 1, 16, 1>}]} {
    %cst = arith.constant 0.000000e+00 : f32
    %0 = vector.broadcast %cst : f32 to vector<16x1xf32>
    %cst_0 = arith.constant 0.000000e+00 : f32
    %1 = vector.broadcast %cst_0 : f32 to vector<16x1xf32>
    %c0 = arith.constant 0 : index
    %c0_1 = arith.constant 0 : index
    %2 = vector.load %arg2[%c0, %c0_1] : memref<16x144xf32, #tpu.memory_space<vmem>>, vector<16x144xf32>
    %c0_2 = arith.constant 0 : index
    %c0_3 = arith.constant 0 : index
    %3 = vector.load %arg3[%c0_2, %c0_3] : memref<16x1xf32, #tpu.memory_space<vmem>>, vector<16x1xf32>
    %c0_4 = arith.constant 0 : index
    %c0_5 = arith.constant 0 : index
    %c0_6 = arith.constant 0 : index
    %4 = vector.load %arg1[%c0_4, %c0_5, %c0_6] : memref<1x16x256xf32, #tpu.memory_space<vmem>>, vector<1x16x256xf32>
    %5 = vector.shape_cast %4 : vector<1x16x256xf32> to vector<16x256xf32>
    %6 = tpu.iota {dimensions = array<i32: 1>} : vector<1x256xi32>
    %c16_i32 = arith.constant 16 : i32
    %c0_i32 = arith.constant 0 : i32
    %7 = arith.cmpi eq, %c16_i32, %c0_i32 : i32
    %c1_i32 = arith.constant 1 : i32
    %8 = arith.select %7, %c1_i32, %c16_i32 : i32
    %9 = vector.broadcast %8 : i32 to vector<1x256xi32>
    %10 = arith.remsi %6, %9 : vector<1x256xi32>
    %c0_i32_7 = arith.constant 0 : i32
    %11 = vector.broadcast %c0_i32_7 : i32 to vector<1x256xi32>
    %12 = arith.cmpi ne, %10, %11 : vector<1x256xi32>
    %c0_i32_8 = arith.constant 0 : i32
    %13 = vector.broadcast %c0_i32_8 : i32 to vector<1x256xi32>
    %14 = arith.cmpi slt, %10, %13 : vector<1x256xi32>
    %c0_i32_9 = arith.constant 0 : i32
    %15 = arith.cmpi slt, %8, %c0_i32_9 : i32
    %16 = vector.broadcast %15 : i1 to vector<1x256xi1>
    %17 = vector.broadcast %16 : vector<1x256xi1> to vector<1x256xi1>
    %18 = arith.xori %14, %17 : vector<1x256xi1>
    %19 = arith.andi %18, %12 : vector<1x256xi1>
    %20 = vector.broadcast %8 : i32 to vector<1x256xi32>
    %21 = arith.addi %10, %20 : vector<1x256xi32>
    %22 = arith.select %19, %21, %10 : vector<1x256xi1>, vector<1x256xi32>
    %cst_10 = arith.constant 0.000000e+00 : f32
    %23 = vector.broadcast %cst_10 : f32 to vector<16x256xf32>
    %c17_i32 = arith.constant 17 : i32
    %24 = tpu.dynamic_rotate %5 by %c17_i32 dim 1 : vector<16x256xf32>, i32 -> vector<16x256xf32>
    %c16_i32_11 = arith.constant 16 : i32
    %25 = vector.broadcast %c16_i32_11 : i32 to vector<1x256xi32>
    %26 = arith.cmpi sge, %6, %25 : vector<1x256xi32>
    %c1_i32_12 = arith.constant 1 : i32
    %27 = vector.broadcast %c1_i32_12 : i32 to vector<1x256xi32>
    %28 = arith.cmpi sge, %22, %27 : vector<1x256xi32>
    %29 = arith.andi %26, %28 : vector<1x256xi1>
    %30 = vector.shape_cast %29 : vector<1x256xi1> to vector<1x256xi1>
    %31 = vector.broadcast %30 : vector<1x256xi1> to vector<16x256xi1>
    %32 = arith.select %31, %24, %23 : vector<16x256xi1>, vector<16x256xf32>
    %c16_i32_13 = arith.constant 16 : i32
    %33 = tpu.dynamic_rotate %5 by %c16_i32_13 dim 1 : vector<16x256xf32>, i32 -> vector<16x256xf32>
    %c16_i32_14 = arith.constant 16 : i32
    %34 = vector.broadcast %c16_i32_14 : i32 to vector<1x256xi32>
    %35 = arith.cmpi sge, %6, %34 : vector<1x256xi32>
    %36 = vector.shape_cast %35 : vector<1x256xi1> to vector<1x256xi1>
    %37 = vector.broadcast %36 : vector<1x256xi1> to vector<16x256xi1>
    %38 = arith.select %37, %33, %23 : vector<16x256xi1>, vector<16x256xf32>
    %c15_i32 = arith.constant 15 : i32
    %39 = tpu.dynamic_rotate %5 by %c15_i32 dim 1 : vector<16x256xf32>, i32 -> vector<16x256xf32>
    %c16_i32_15 = arith.constant 16 : i32
    %40 = vector.broadcast %c16_i32_15 : i32 to vector<1x256xi32>
    %41 = arith.cmpi sge, %6, %40 : vector<1x256xi32>
    %c15_i32_16 = arith.constant 15 : i32
    %42 = vector.broadcast %c15_i32_16 : i32 to vector<1x256xi32>
    %43 = arith.cmpi slt, %22, %42 : vector<1x256xi32>
    %44 = arith.andi %41, %43 : vector<1x256xi1>
    %45 = vector.shape_cast %44 : vector<1x256xi1> to vector<1x256xi1>
    %46 = vector.broadcast %45 : vector<1x256xi1> to vector<16x256xi1>
    %47 = arith.select %46, %39, %23 : vector<16x256xi1>, vector<16x256xf32>
    %c1_i32_17 = arith.constant 1 : i32
    %48 = tpu.dynamic_rotate %5 by %c1_i32_17 dim 1 : vector<16x256xf32>, i32 -> vector<16x256xf32>
    %c1_i32_18 = arith.constant 1 : i32
    %49 = vector.broadcast %c1_i32_18 : i32 to vector<1x256xi32>
    %50 = arith.cmpi sge, %22, %49 : vector<1x256xi32>
    %51 = vector.shape_cast %50 : vector<1x256xi1> to vector<1x256xi1>
    %52 = vector.broadcast %51 : vector<1x256xi1> to vector<16x256xi1>
    %53 = arith.select %52, %48, %23 : vector<16x256xi1>, vector<16x256xf32>
    %c255_i32 = arith.constant 255 : i32
    %54 = tpu.dynamic_rotate %5 by %c255_i32 dim 1 : vector<16x256xf32>, i32 -> vector<16x256xf32>
    %c15_i32_19 = arith.constant 15 : i32
    %55 = vector.broadcast %c15_i32_19 : i32 to vector<1x256xi32>
    %56 = arith.cmpi slt, %22, %55 : vector<1x256xi32>
    %57 = vector.shape_cast %56 : vector<1x256xi1> to vector<1x256xi1>
    %58 = vector.broadcast %57 : vector<1x256xi1> to vector<16x256xi1>
    %59 = arith.select %58, %54, %23 : vector<16x256xi1>, vector<16x256xf32>
    %c241_i32 = arith.constant 241 : i32
    %60 = tpu.dynamic_rotate %5 by %c241_i32 dim 1 : vector<16x256xf32>, i32 -> vector<16x256xf32>
    %c240_i32 = arith.constant 240 : i32
    %61 = vector.broadcast %c240_i32 : i32 to vector<1x256xi32>
    %62 = arith.cmpi slt, %6, %61 : vector<1x256xi32>
    %c1_i32_20 = arith.constant 1 : i32
    %63 = vector.broadcast %c1_i32_20 : i32 to vector<1x256xi32>
    %64 = arith.cmpi sge, %22, %63 : vector<1x256xi32>
    %65 = arith.andi %62, %64 : vector<1x256xi1>
    %66 = vector.shape_cast %65 : vector<1x256xi1> to vector<1x256xi1>
    %67 = vector.broadcast %66 : vector<1x256xi1> to vector<16x256xi1>
    %68 = arith.select %67, %60, %23 : vector<16x256xi1>, vector<16x256xf32>
    %c240_i32_21 = arith.constant 240 : i32
    %69 = tpu.dynamic_rotate %5 by %c240_i32_21 dim 1 : vector<16x256xf32>, i32 -> vector<16x256xf32>
    %c240_i32_22 = arith.constant 240 : i32
    %70 = vector.broadcast %c240_i32_22 : i32 to vector<1x256xi32>
    %71 = arith.cmpi slt, %6, %70 : vector<1x256xi32>
    %72 = vector.shape_cast %71 : vector<1x256xi1> to vector<1x256xi1>
    %73 = vector.broadcast %72 : vector<1x256xi1> to vector<16x256xi1>
    %74 = arith.select %73, %69, %23 : vector<16x256xi1>, vector<16x256xf32>
    %c239_i32 = arith.constant 239 : i32
    %75 = tpu.dynamic_rotate %5 by %c239_i32 dim 1 : vector<16x256xf32>, i32 -> vector<16x256xf32>
    %c240_i32_23 = arith.constant 240 : i32
    %76 = vector.broadcast %c240_i32_23 : i32 to vector<1x256xi32>
    %77 = arith.cmpi slt, %6, %76 : vector<1x256xi32>
    %c15_i32_24 = arith.constant 15 : i32
    %78 = vector.broadcast %c15_i32_24 : i32 to vector<1x256xi32>
    %79 = arith.cmpi slt, %22, %78 : vector<1x256xi32>
    %80 = arith.andi %77, %79 : vector<1x256xi1>
    %81 = vector.shape_cast %80 : vector<1x256xi1> to vector<1x256xi1>
    %82 = vector.broadcast %81 : vector<1x256xi1> to vector<16x256xi1>
    %83 = arith.select %82, %75, %23 : vector<16x256xi1>, vector<16x256xf32>
    %84 = tpu.concatenate %32, %38, %47, %53, %5, %59, %68, %74, %83 in 0 : vector<16x256xf32>, vector<16x256xf32>, vector<16x256xf32>, vector<16x256xf32>, vector<16x256xf32>, vector<16x256xf32>, vector<16x256xf32>, vector<16x256xf32>, vector<16x256xf32> -> vector<144x256xf32>
    %cst_25 = arith.constant dense<0.000000e+00> : vector<16x256xf32>
    %85 = tpu.matmul %2, %84, %cst_25 {dimension_numbers = #tpu.dot_dimension_numbers<[1], [0], [0], [1], [0, 0, 1, 1], [], []>} : vector<16x144xf32>, vector<144x256xf32>, vector<16x256xf32> -> vector<16x256xf32>
    %cst_26 = arith.constant dense<0.000000e+00> : vector<16xf32>
    %86 = vector.multi_reduction <add>, %85, %cst_26 [1] : vector<16x256xf32> to vector<16xf32>
    %87 = vector.shape_cast %86 : vector<16xf32> to vector<16x1xf32>
    %88 = arith.addf %0, %87 : vector<16x1xf32>
    %89 = arith.mulf %85, %85 : vector<16x256xf32>
    %cst_27 = arith.constant dense<0.000000e+00> : vector<16xf32>
    %90 = vector.multi_reduction <add>, %89, %cst_27 [1] : vector<16x256xf32> to vector<16xf32>
    %91 = vector.shape_cast %90 : vector<16xf32> to vector<16x1xf32>
    %92 = arith.addf %1, %91 : vector<16x1xf32>
    %93 = vector.broadcast %3 : vector<16x1xf32> to vector<16x256xf32>
    %94 = arith.addf %85, %93 : vector<16x256xf32>
    %c0_28 = arith.constant 0 : index
    %c0_29 = arith.constant 0 : index
    %c0_30 = arith.constant 0 : index
    %95 = vector.load %arg4[%c0_28, %c0_29, %c0_30] : memref<1x16x256xf32, #tpu.memory_space<vmem>>, vector<1x16x256xf32>
    %96 = vector.shape_cast %95 : vector<1x16x256xf32> to vector<16x256xf32>
    %97 = vector.shape_cast %94 : vector<16x256xf32> to vector<1x16x256xf32>
    tpu.vector_store %arg4[%c0_28, %c0_29, %c0_30], %97 {strides = array<i32>} : memref<1x16x256xf32, #tpu.memory_space<vmem>>, vector<1x16x256xf32>,
    %c0_31 = arith.constant 0 : index
    %c0_32 = arith.constant 0 : index
    %c0_33 = arith.constant 0 : index
    %98 = vector.load %arg5[%c0_31, %c0_32, %c0_33] : memref<1x16x1xf32, #tpu.memory_space<vmem>>, vector<1x16x1xf32>
    %99 = vector.shape_cast %98 : vector<1x16x1xf32> to vector<16x1xf32>
    %100 = vector.shape_cast %88 : vector<16x1xf32> to vector<1x16x1xf32>
    tpu.vector_store %arg5[%c0_31, %c0_32, %c0_33], %100 {strides = array<i32>} : memref<1x16x1xf32, #tpu.memory_space<vmem>>, vector<1x16x1xf32>,
    %c0_34 = arith.constant 0 : index
    %c0_35 = arith.constant 0 : index
    %c0_36 = arith.constant 0 : index
    %101 = vector.load %arg6[%c0_34, %c0_35, %c0_36] : memref<1x16x1xf32, #tpu.memory_space<vmem>>, vector<1x16x1xf32>
    %102 = vector.shape_cast %101 : vector<1x16x1xf32> to vector<16x1xf32>
    %103 = vector.shape_cast %92 : vector<16x1xf32> to vector<1x16x1xf32>
    tpu.vector_store %arg6[%c0_34, %c0_35, %c0_36], %103 {strides = array<i32>} : memref<1x16x1xf32, #tpu.memory_space<vmem>>, vector<1x16x1xf32>,
    return
  }
  func.func @transform_0(%arg0: i32) -> (i32, i32, i32) {
    %c0_i32 = arith.constant 0 : i32
    %c0_i32_0 = arith.constant 0 : i32
    %c0_i32_1 = arith.constant 0 : i32
    return %arg0, %c0_i32, %c0_i32_0 : i32, i32, i32
  }
  func.func @transform_1(%arg0: i32) -> (i32, i32) {
    %c0_i32 = arith.constant 0 : i32
    %c0_i32_0 = arith.constant 0 : i32
    %c0_i32_1 = arith.constant 0 : i32
    return %c0_i32, %c0_i32_0 : i32, i32
  }
  func.func @transform_2(%arg0: i32) -> (i32, i32) {
    %c0_i32 = arith.constant 0 : i32
    %c0_i32_0 = arith.constant 0 : i32
    %c0_i32_1 = arith.constant 0 : i32
    return %c0_i32, %c0_i32_0 : i32, i32
  }
  func.func @transform_3(%arg0: i32) -> (i32, i32, i32) {
    %c0_i32 = arith.constant 0 : i32
    %c0_i32_0 = arith.constant 0 : i32
    %c0_i32_1 = arith.constant 0 : i32
    return %arg0, %c0_i32, %c0_i32_0 : i32, i32, i32
  }
  func.func @transform_4(%arg0: i32) -> (i32, i32, i32) {
    %c0_i32 = arith.constant 0 : i32
    %c0_i32_0 = arith.constant 0 : i32
    %c0_i32_1 = arith.constant 0 : i32
    return %arg0, %c0_i32, %c0_i32_0 : i32, i32, i32
  }
  func.func @transform_5(%arg0: i32) -> (i32, i32, i32) {
    %c0_i32 = arith.constant 0 : i32
    %c0_i32_0 = arith.constant 0 : i32
    %c0_i32_1 = arith.constant 0 : i32
    return %arg0, %c0_i32, %c0_i32_0 : i32, i32, i32
  }
}

module attributes {stable_mosaic.version = 11 : i64} {
  func.func @_bn_relu_conv2_kernel(%arg0: i32, %arg1: memref<1x16x256xf32, #tpu.memory_space<vmem>>, %arg2: memref<16x1xf32, #tpu.memory_space<vmem>>, %arg3: memref<16x1xf32, #tpu.memory_space<vmem>>, %arg4: memref<16x144xf32, #tpu.memory_space<vmem>>, %arg5: memref<16x1xf32, #tpu.memory_space<vmem>>, %arg6: memref<1x16x256xf32, #tpu.memory_space<vmem>>, %arg7: memref<1x16x1xf32, #tpu.memory_space<vmem>>, %arg8: memref<1x16x1xf32, #tpu.memory_space<vmem>>) attributes {dimension_semantics = [#tpu.dimension_semantics<parallel>], iteration_bounds = array<i64: 2>, scalar_prefetch = 0 : i64, scratch_operands = 0 : i64, tpu.core_type = #tpu.core_type<tc>, window_params = [{transform_indices = @transform_0, window_bounds = array<i64: 1, 16, 256>}, {pipeline_mode = #tpu.pipeline_mode<synchronous>, transform_indices = @transform_1, window_bounds = array<i64: 16, 1>}, {pipeline_mode = #tpu.pipeline_mode<synchronous>, transform_indices = @transform_2, window_bounds = array<i64: 16, 1>}, {pipeline_mode = #tpu.pipeline_mode<synchronous>, transform_indices = @transform_3, window_bounds = array<i64: 16, 144>}, {pipeline_mode = #tpu.pipeline_mode<synchronous>, transform_indices = @transform_4, window_bounds = array<i64: 16, 1>}, {transform_indices = @transform_5, window_bounds = array<i64: 1, 16, 256>}, {transform_indices = @transform_6, window_bounds = array<i64: 1, 16, 1>}, {transform_indices = @transform_7, window_bounds = array<i64: 1, 16, 1>}]} {
    %cst = arith.constant 0.000000e+00 : f32
    %0 = vector.broadcast %cst : f32 to vector<16x1xf32>
    %cst_0 = arith.constant 0.000000e+00 : f32
    %1 = vector.broadcast %cst_0 : f32 to vector<16x1xf32>
    %c0 = arith.constant 0 : index
    %c0_1 = arith.constant 0 : index
    %2 = vector.load %arg2[%c0, %c0_1] : memref<16x1xf32, #tpu.memory_space<vmem>>, vector<16x1xf32>
    %c0_2 = arith.constant 0 : index
    %c0_3 = arith.constant 0 : index
    %3 = vector.load %arg3[%c0_2, %c0_3] : memref<16x1xf32, #tpu.memory_space<vmem>>, vector<16x1xf32>
    %c0_4 = arith.constant 0 : index
    %c0_5 = arith.constant 0 : index
    %4 = vector.load %arg4[%c0_4, %c0_5] : memref<16x144xf32, #tpu.memory_space<vmem>>, vector<16x144xf32>
    %c0_6 = arith.constant 0 : index
    %c0_7 = arith.constant 0 : index
    %5 = vector.load %arg5[%c0_6, %c0_7] : memref<16x1xf32, #tpu.memory_space<vmem>>, vector<16x1xf32>
    %c0_8 = arith.constant 0 : index
    %c0_9 = arith.constant 0 : index
    %c0_10 = arith.constant 0 : index
    %6 = vector.load %arg1[%c0_8, %c0_9, %c0_10] : memref<1x16x256xf32, #tpu.memory_space<vmem>>, vector<1x16x256xf32>
    %7 = vector.shape_cast %6 : vector<1x16x256xf32> to vector<16x256xf32>
    %8 = vector.broadcast %2 : vector<16x1xf32> to vector<16x256xf32>
    %9 = arith.mulf %7, %8 : vector<16x256xf32>
    %10 = vector.broadcast %3 : vector<16x1xf32> to vector<16x256xf32>
    %11 = arith.addf %9, %10 : vector<16x256xf32>
    %cst_11 = arith.constant 0.000000e+00 : f32
    %12 = vector.broadcast %cst_11 : f32 to vector<16x256xf32>
    %13 = arith.maximumf %11, %12 : vector<16x256xf32>
    %14 = tpu.iota {dimensions = array<i32: 1>} : vector<1x256xi32>
    %c16_i32 = arith.constant 16 : i32
    %c0_i32 = arith.constant 0 : i32
    %15 = arith.cmpi eq, %c16_i32, %c0_i32 : i32
    %c1_i32 = arith.constant 1 : i32
    %16 = arith.select %15, %c1_i32, %c16_i32 : i32
    %17 = vector.broadcast %16 : i32 to vector<1x256xi32>
    %18 = arith.remsi %14, %17 : vector<1x256xi32>
    %c0_i32_12 = arith.constant 0 : i32
    %19 = vector.broadcast %c0_i32_12 : i32 to vector<1x256xi32>
    %20 = arith.cmpi ne, %18, %19 : vector<1x256xi32>
    %c0_i32_13 = arith.constant 0 : i32
    %21 = vector.broadcast %c0_i32_13 : i32 to vector<1x256xi32>
    %22 = arith.cmpi slt, %18, %21 : vector<1x256xi32>
    %c0_i32_14 = arith.constant 0 : i32
    %23 = arith.cmpi slt, %16, %c0_i32_14 : i32
    %24 = vector.broadcast %23 : i1 to vector<1x256xi1>
    %25 = vector.broadcast %24 : vector<1x256xi1> to vector<1x256xi1>
    %26 = arith.xori %22, %25 : vector<1x256xi1>
    %27 = arith.andi %26, %20 : vector<1x256xi1>
    %28 = vector.broadcast %16 : i32 to vector<1x256xi32>
    %29 = arith.addi %18, %28 : vector<1x256xi32>
    %30 = arith.select %27, %29, %18 : vector<1x256xi1>, vector<1x256xi32>
    %cst_15 = arith.constant 0.000000e+00 : f32
    %31 = vector.broadcast %cst_15 : f32 to vector<16x256xf32>
    %c17_i32 = arith.constant 17 : i32
    %32 = tpu.dynamic_rotate %13 by %c17_i32 dim 1 : vector<16x256xf32>, i32 -> vector<16x256xf32>
    %c16_i32_16 = arith.constant 16 : i32
    %33 = vector.broadcast %c16_i32_16 : i32 to vector<1x256xi32>
    %34 = arith.cmpi sge, %14, %33 : vector<1x256xi32>
    %c1_i32_17 = arith.constant 1 : i32
    %35 = vector.broadcast %c1_i32_17 : i32 to vector<1x256xi32>
    %36 = arith.cmpi sge, %30, %35 : vector<1x256xi32>
    %37 = arith.andi %34, %36 : vector<1x256xi1>
    %38 = vector.shape_cast %37 : vector<1x256xi1> to vector<1x256xi1>
    %39 = vector.broadcast %38 : vector<1x256xi1> to vector<16x256xi1>
    %40 = arith.select %39, %32, %31 : vector<16x256xi1>, vector<16x256xf32>
    %c16_i32_18 = arith.constant 16 : i32
    %41 = tpu.dynamic_rotate %13 by %c16_i32_18 dim 1 : vector<16x256xf32>, i32 -> vector<16x256xf32>
    %c16_i32_19 = arith.constant 16 : i32
    %42 = vector.broadcast %c16_i32_19 : i32 to vector<1x256xi32>
    %43 = arith.cmpi sge, %14, %42 : vector<1x256xi32>
    %44 = vector.shape_cast %43 : vector<1x256xi1> to vector<1x256xi1>
    %45 = vector.broadcast %44 : vector<1x256xi1> to vector<16x256xi1>
    %46 = arith.select %45, %41, %31 : vector<16x256xi1>, vector<16x256xf32>
    %c15_i32 = arith.constant 15 : i32
    %47 = tpu.dynamic_rotate %13 by %c15_i32 dim 1 : vector<16x256xf32>, i32 -> vector<16x256xf32>
    %c16_i32_20 = arith.constant 16 : i32
    %48 = vector.broadcast %c16_i32_20 : i32 to vector<1x256xi32>
    %49 = arith.cmpi sge, %14, %48 : vector<1x256xi32>
    %c15_i32_21 = arith.constant 15 : i32
    %50 = vector.broadcast %c15_i32_21 : i32 to vector<1x256xi32>
    %51 = arith.cmpi slt, %30, %50 : vector<1x256xi32>
    %52 = arith.andi %49, %51 : vector<1x256xi1>
    %53 = vector.shape_cast %52 : vector<1x256xi1> to vector<1x256xi1>
    %54 = vector.broadcast %53 : vector<1x256xi1> to vector<16x256xi1>
    %55 = arith.select %54, %47, %31 : vector<16x256xi1>, vector<16x256xf32>
    %c1_i32_22 = arith.constant 1 : i32
    %56 = tpu.dynamic_rotate %13 by %c1_i32_22 dim 1 : vector<16x256xf32>, i32 -> vector<16x256xf32>
    %c1_i32_23 = arith.constant 1 : i32
    %57 = vector.broadcast %c1_i32_23 : i32 to vector<1x256xi32>
    %58 = arith.cmpi sge, %30, %57 : vector<1x256xi32>
    %59 = vector.shape_cast %58 : vector<1x256xi1> to vector<1x256xi1>
    %60 = vector.broadcast %59 : vector<1x256xi1> to vector<16x256xi1>
    %61 = arith.select %60, %56, %31 : vector<16x256xi1>, vector<16x256xf32>
    %c255_i32 = arith.constant 255 : i32
    %62 = tpu.dynamic_rotate %13 by %c255_i32 dim 1 : vector<16x256xf32>, i32 -> vector<16x256xf32>
    %c15_i32_24 = arith.constant 15 : i32
    %63 = vector.broadcast %c15_i32_24 : i32 to vector<1x256xi32>
    %64 = arith.cmpi slt, %30, %63 : vector<1x256xi32>
    %65 = vector.shape_cast %64 : vector<1x256xi1> to vector<1x256xi1>
    %66 = vector.broadcast %65 : vector<1x256xi1> to vector<16x256xi1>
    %67 = arith.select %66, %62, %31 : vector<16x256xi1>, vector<16x256xf32>
    %c241_i32 = arith.constant 241 : i32
    %68 = tpu.dynamic_rotate %13 by %c241_i32 dim 1 : vector<16x256xf32>, i32 -> vector<16x256xf32>
    %c240_i32 = arith.constant 240 : i32
    %69 = vector.broadcast %c240_i32 : i32 to vector<1x256xi32>
    %70 = arith.cmpi slt, %14, %69 : vector<1x256xi32>
    %c1_i32_25 = arith.constant 1 : i32
    %71 = vector.broadcast %c1_i32_25 : i32 to vector<1x256xi32>
    %72 = arith.cmpi sge, %30, %71 : vector<1x256xi32>
    %73 = arith.andi %70, %72 : vector<1x256xi1>
    %74 = vector.shape_cast %73 : vector<1x256xi1> to vector<1x256xi1>
    %75 = vector.broadcast %74 : vector<1x256xi1> to vector<16x256xi1>
    %76 = arith.select %75, %68, %31 : vector<16x256xi1>, vector<16x256xf32>
    %c240_i32_26 = arith.constant 240 : i32
    %77 = tpu.dynamic_rotate %13 by %c240_i32_26 dim 1 : vector<16x256xf32>, i32 -> vector<16x256xf32>
    %c240_i32_27 = arith.constant 240 : i32
    %78 = vector.broadcast %c240_i32_27 : i32 to vector<1x256xi32>
    %79 = arith.cmpi slt, %14, %78 : vector<1x256xi32>
    %80 = vector.shape_cast %79 : vector<1x256xi1> to vector<1x256xi1>
    %81 = vector.broadcast %80 : vector<1x256xi1> to vector<16x256xi1>
    %82 = arith.select %81, %77, %31 : vector<16x256xi1>, vector<16x256xf32>
    %c239_i32 = arith.constant 239 : i32
    %83 = tpu.dynamic_rotate %13 by %c239_i32 dim 1 : vector<16x256xf32>, i32 -> vector<16x256xf32>
    %c240_i32_28 = arith.constant 240 : i32
    %84 = vector.broadcast %c240_i32_28 : i32 to vector<1x256xi32>
    %85 = arith.cmpi slt, %14, %84 : vector<1x256xi32>
    %c15_i32_29 = arith.constant 15 : i32
    %86 = vector.broadcast %c15_i32_29 : i32 to vector<1x256xi32>
    %87 = arith.cmpi slt, %30, %86 : vector<1x256xi32>
    %88 = arith.andi %85, %87 : vector<1x256xi1>
    %89 = vector.shape_cast %88 : vector<1x256xi1> to vector<1x256xi1>
    %90 = vector.broadcast %89 : vector<1x256xi1> to vector<16x256xi1>
    %91 = arith.select %90, %83, %31 : vector<16x256xi1>, vector<16x256xf32>
    %92 = tpu.concatenate %40, %46, %55, %61, %13, %67, %76, %82, %91 in 0 : vector<16x256xf32>, vector<16x256xf32>, vector<16x256xf32>, vector<16x256xf32>, vector<16x256xf32>, vector<16x256xf32>, vector<16x256xf32>, vector<16x256xf32>, vector<16x256xf32> -> vector<144x256xf32>
    %cst_30 = arith.constant dense<0.000000e+00> : vector<16x256xf32>
    %93 = tpu.matmul %4, %92, %cst_30 {dimension_numbers = #tpu.dot_dimension_numbers<[1], [0], [0], [1], [0, 0, 1, 1], [], []>} : vector<16x144xf32>, vector<144x256xf32>, vector<16x256xf32> -> vector<16x256xf32>
    %cst_31 = arith.constant dense<0.000000e+00> : vector<16xf32>
    %94 = vector.multi_reduction <add>, %93, %cst_31 [1] : vector<16x256xf32> to vector<16xf32>
    %95 = vector.shape_cast %94 : vector<16xf32> to vector<16x1xf32>
    %96 = arith.addf %0, %95 : vector<16x1xf32>
    %97 = arith.mulf %93, %93 : vector<16x256xf32>
    %cst_32 = arith.constant dense<0.000000e+00> : vector<16xf32>
    %98 = vector.multi_reduction <add>, %97, %cst_32 [1] : vector<16x256xf32> to vector<16xf32>
    %99 = vector.shape_cast %98 : vector<16xf32> to vector<16x1xf32>
    %100 = arith.addf %1, %99 : vector<16x1xf32>
    %101 = vector.broadcast %5 : vector<16x1xf32> to vector<16x256xf32>
    %102 = arith.addf %93, %101 : vector<16x256xf32>
    %c0_33 = arith.constant 0 : index
    %c0_34 = arith.constant 0 : index
    %c0_35 = arith.constant 0 : index
    %103 = vector.load %arg6[%c0_33, %c0_34, %c0_35] : memref<1x16x256xf32, #tpu.memory_space<vmem>>, vector<1x16x256xf32>
    %104 = vector.shape_cast %103 : vector<1x16x256xf32> to vector<16x256xf32>
    %105 = vector.shape_cast %102 : vector<16x256xf32> to vector<1x16x256xf32>
    tpu.vector_store %arg6[%c0_33, %c0_34, %c0_35], %105 {strides = array<i32>} : memref<1x16x256xf32, #tpu.memory_space<vmem>>, vector<1x16x256xf32>,
    %c0_36 = arith.constant 0 : index
    %c0_37 = arith.constant 0 : index
    %c0_38 = arith.constant 0 : index
    %106 = vector.load %arg7[%c0_36, %c0_37, %c0_38] : memref<1x16x1xf32, #tpu.memory_space<vmem>>, vector<1x16x1xf32>
    %107 = vector.shape_cast %106 : vector<1x16x1xf32> to vector<16x1xf32>
    %108 = vector.shape_cast %96 : vector<16x1xf32> to vector<1x16x1xf32>
    tpu.vector_store %arg7[%c0_36, %c0_37, %c0_38], %108 {strides = array<i32>} : memref<1x16x1xf32, #tpu.memory_space<vmem>>, vector<1x16x1xf32>,
    %c0_39 = arith.constant 0 : index
    %c0_40 = arith.constant 0 : index
    %c0_41 = arith.constant 0 : index
    %109 = vector.load %arg8[%c0_39, %c0_40, %c0_41] : memref<1x16x1xf32, #tpu.memory_space<vmem>>, vector<1x16x1xf32>
    %110 = vector.shape_cast %109 : vector<1x16x1xf32> to vector<16x1xf32>
    %111 = vector.shape_cast %100 : vector<16x1xf32> to vector<1x16x1xf32>
    tpu.vector_store %arg8[%c0_39, %c0_40, %c0_41], %111 {strides = array<i32>} : memref<1x16x1xf32, #tpu.memory_space<vmem>>, vector<1x16x1xf32>,
    return
  }
  func.func @transform_0(%arg0: i32) -> (i32, i32, i32) {
    %c0_i32 = arith.constant 0 : i32
    %c0_i32_0 = arith.constant 0 : i32
    %c0_i32_1 = arith.constant 0 : i32
    return %arg0, %c0_i32, %c0_i32_0 : i32, i32, i32
  }
  func.func @transform_1(%arg0: i32) -> (i32, i32) {
    %c0_i32 = arith.constant 0 : i32
    %c0_i32_0 = arith.constant 0 : i32
    %c0_i32_1 = arith.constant 0 : i32
    return %c0_i32, %c0_i32_0 : i32, i32
  }
  func.func @transform_2(%arg0: i32) -> (i32, i32) {
    %c0_i32 = arith.constant 0 : i32
    %c0_i32_0 = arith.constant 0 : i32
    %c0_i32_1 = arith.constant 0 : i32
    return %c0_i32, %c0_i32_0 : i32, i32
  }
  func.func @transform_3(%arg0: i32) -> (i32, i32) {
    %c0_i32 = arith.constant 0 : i32
    %c0_i32_0 = arith.constant 0 : i32
    %c0_i32_1 = arith.constant 0 : i32
    return %c0_i32, %c0_i32_0 : i32, i32
  }
  func.func @transform_4(%arg0: i32) -> (i32, i32) {
    %c0_i32 = arith.constant 0 : i32
    %c0_i32_0 = arith.constant 0 : i32
    %c0_i32_1 = arith.constant 0 : i32
    return %c0_i32, %c0_i32_0 : i32, i32
  }
  func.func @transform_5(%arg0: i32) -> (i32, i32, i32) {
    %c0_i32 = arith.constant 0 : i32
    %c0_i32_0 = arith.constant 0 : i32
    %c0_i32_1 = arith.constant 0 : i32
    return %arg0, %c0_i32, %c0_i32_0 : i32, i32, i32
  }
  func.func @transform_6(%arg0: i32) -> (i32, i32, i32) {
    %c0_i32 = arith.constant 0 : i32
    %c0_i32_0 = arith.constant 0 : i32
    %c0_i32_1 = arith.constant 0 : i32
    return %arg0, %c0_i32, %c0_i32_0 : i32, i32, i32
  }
  func.func @transform_7(%arg0: i32) -> (i32, i32, i32) {
    %c0_i32 = arith.constant 0 : i32
    %c0_i32_0 = arith.constant 0 : i32
    %c0_i32_1 = arith.constant 0 : i32
    return %arg0, %c0_i32, %c0_i32_0 : i32, i32, i32
  }
}

</mosaic_0001>

<llo_original>
// kernel: downblock_forward.2
$region0: #{downblock_forward.2}
  #allocation0 [shape = 'u32[]', space=smem, size = 0x4, offset = 0x4, fixed_abs, tag = 'smem constant byte address 0x4 - core index']
  #allocation1 [shape = 'u32[144,128]{1,0:T(1,128)}', space=vmem, size = 0x12000, scoped, tag = 'internal scratch']
  %s0 = inlined_call_operand.vmem [shape: f32[2,16,256], index: 0, kind: input, shape index: {}]
  %s1 = inlined_call_operand.vmem [shape: f32[16,144], index: 1, kind: input, shape index: {}]
  %s2 = inlined_call_operand.vmem [shape: f32[16,1], index: 2, kind: input, shape index: {}]
  %s3 = inlined_call_operand.vmem [shape: f32[2,16,256], index: 3, kind: output, shape index: {0}]
  %s4 = inlined_call_operand.vmem [shape: f32[2,16,1], index: 4, kind: output, shape index: {1}]
  %s5 = inlined_call_operand.vmem [shape: f32[2,16,1], index: 5, kind: output, shape index: {2}]
  %6 = xla_tuple %s3, %s4, %s5
  %s7 = sld [smem:[#allocation0]]
  $region61: #{downblock_forward.2} parent=0
    _
  %s9 = ssub.s32 1, %s7
  %s10 = scalar_select 0, %s9, %s7
  loop: start=0, step=1, limit=4
  $region2: #{downblock_forward.2} parent=0 // loop_pre_header
    _
  $region3: #{downblock_forward.2} parent=0 // loop_header
    %s12 = sphi 0, %s16
    %p13 = scmp.ge.s32.totalorder %s12, 4
    %s22 = sphi 0, %s24
    %s25 = sphi 0, %s22
    %s26 = sphi 0, %s25
    %s42 = sphi 0, %s26
    %s46 = sphi 0, %s46
    %s48 = sphi 0, %s46
    %s49 = sphi 0, %s48
    %s63 = sphi 0, %s49
    %s67 = sphi 0, %s67
    %s69 = sphi 0, %s67
    %s70 = sphi 0, %s69
    %s84 = sphi 0, %s70
    %s90 = sphi 0, %s92
    %s93 = sphi 0, %s90
    %s94 = sphi 0, %s93
    %s110 = sphi 0, %s94
    %s116 = sphi 0, %s118
    %s119 = sphi 0, %s116
    %s120 = sphi 0, %s119
    %s136 = sphi 0, %s120
    %s142 = sphi 0, %s144
    %s145 = sphi 0, %s142
    %s146 = sphi 0, %s145
    %s162 = sphi 0, %s146
  $region4: #{downblock_forward.2} parent=0 // loop_header_branch
    %15 = sbr.rel (%p13) target = $region8
  $region5: #{downblock_forward.2} parent=0 // loop_body
    %s17 = ssub.s32 %s12, 1
    %s18 = ssub.s32 %s12, 2
    %s19 = sadd.s32 %s12, 1
    %s20 = ssub.s32 %s12, %s19
    %p21 = scmp.eq.s32.totalorder %s20, 0
    %s23 = sadd.s32 %s22, 1
    %s24 = scalar_select %p21, %s22, %s23
    %p27 = pneg %p21
    %p28 = scmp.eq.s32.totalorder %s12, 1
    %p29 = por %p27, %p28
    %p30 = scmp.ne.s32.totalorder %s22, %s25
    %p31 = scmp.eq.s32.totalorder %s12, 0
    %p32 = por %p30, %p31
    %p33 = scmp.ne.s32.totalorder %s22, %s25
    %p34 = scmp.eq.s32.totalorder %s17, 1
    %p35 = por %p33, %p34
    %p36 = scmp.ne.s32.totalorder %s25, %s26
    %p37 = scmp.eq.s32.totalorder %s17, 0
    %p38 = por %p36, %p37
    %p39 = scmp.ne.s32.totalorder %s25, %s26
    %p40 = scmp.eq.s32.totalorder %s18, 1
    %p41 = por %p39, %p40
    %p43 = scmp.ne.s32.totalorder %s26, %s42
    %p44 = scmp.eq.s32.totalorder %s18, 0
    %p45 = por %p43, %p44
    %s47 = sadd.s32 %s46, 1
    %p50 = scmp.eq.s32.totalorder %s12, 1
    %p51 = scmp.ne.s32.totalorder %s46, %s48
    %p52 = scmp.eq.s32.totalorder %s12, 0
    %p53 = por %p51, %p52
    %p54 = scmp.ne.s32.totalorder %s46, %s48
    %p55 = scmp.eq.s32.totalorder %s17, 1
    %p56 = por %p54, %p55
    %p57 = scmp.ne.s32.totalorder %s48, %s49
    %p58 = scmp.eq.s32.totalorder %s17, 0
    %p59 = por %p57, %p58
    %p60 = scmp.ne.s32.totalorder %s48, %s49
    %p61 = scmp.eq.s32.totalorder %s18, 1
    %p62 = por %p60, %p61
    %p64 = scmp.ne.s32.totalorder %s49, %s63
    %p65 = scmp.eq.s32.totalorder %s18, 0
    %p66 = por %p64, %p65
    %s68 = sadd.s32 %s67, 1
    %p71 = scmp.eq.s32.totalorder %s12, 1
    %p72 = scmp.ne.s32.totalorder %s67, %s69
    %p73 = scmp.eq.s32.totalorder %s12, 0
    %p74 = por %p72, %p73
    %p75 = scmp.ne.s32.totalorder %s67, %s69
    %p76 = scmp.eq.s32.totalorder %s17, 1
    %p77 = por %p75, %p76
    %p78 = scmp.ne.s32.totalorder %s69, %s70
    %p79 = scmp.eq.s32.totalorder %s17, 0
    %p80 = por %p78, %p79
    %p81 = scmp.ne.s32.totalorder %s69, %s70
    %p82 = scmp.eq.s32.totalorder %s18, 1
    %p83 = por %p81, %p82
    %p85 = scmp.ne.s32.totalorder %s70, %s84
    %p86 = scmp.eq.s32.totalorder %s18, 0
    %p87 = por %p85, %p86
    %s88 = ssub.s32 %s12, %s19
    %p89 = scmp.eq.s32.totalorder %s88, 0
    %s91 = sadd.s32 %s90, 1
    %s92 = scalar_select %p89, %s90, %s91
    %p95 = pneg %p89
    %p96 = scmp.eq.s32.totalorder %s12, 1
    %p97 = por %p95, %p96
    %p98 = scmp.ne.s32.totalorder %s90, %s93
    %p99 = scmp.eq.s32.totalorder %s12, 0
    %p100 = por %p98, %p99
    %p101 = scmp.ne.s32.totalorder %s90, %s93
    %p102 = scmp.eq.s32.totalorder %s17, 1
    %p103 = por %p101, %p102
    %p104 = scmp.ne.s32.totalorder %s93, %s94
    %p105 = scmp.eq.s32.totalorder %s17, 0
    %p106 = por %p104, %p105
    %p107 = scmp.ne.s32.totalorder %s93, %s94
    %p108 = scmp.eq.s32.totalorder %s18, 1
    %p109 = por %p107, %p108
    %p111 = scmp.ne.s32.totalorder %s94, %s110
    %p112 = scmp.eq.s32.totalorder %s18, 0
    %p113 = por %p111, %p112
    %s114 = ssub.s32 %s12, %s19
    %p115 = scmp.eq.s32.totalorder %s114, 0
    %s117 = sadd.s32 %s116, 1
    %s118 = scalar_select %p115, %s116, %s117
    %p121 = pneg %p115
    %p122 = scmp.eq.s32.totalorder %s12, 1
    %p123 = por %p121, %p122
    %p124 = scmp.ne.s32.totalorder %s116, %s119
    %p125 = scmp.eq.s32.totalorder %s12, 0
    %p126 = por %p124, %p125
    %p127 = scmp.ne.s32.totalorder %s116, %s119
    %p128 = scmp.eq.s32.totalorder %s17, 1
    %p129 = por %p127, %p128
    %p130 = scmp.ne.s32.totalorder %s119, %s120
    %p131 = scmp.eq.s32.totalorder %s17, 0
    %p132 = por %p130, %p131
    %p133 = scmp.ne.s32.totalorder %s119, %s120
    %p134 = scmp.eq.s32.totalorder %s18, 1
    %p135 = por %p133, %p134
    %p137 = scmp.ne.s32.totalorder %s120, %s136
    %p138 = scmp.eq.s32.totalorder %s18, 0
    %p139 = por %p137, %p138
    %s140 = ssub.s32 %s12, %s19
    %p141 = scmp.eq.s32.totalorder %s140, 0
    %s143 = sadd.s32 %s142, 1
    %s144 = scalar_select %p141, %s142, %s143
    %p147 = pneg %p141
    %p148 = scmp.eq.s32.totalorder %s12, 1
    %p149 = por %p147, %p148
    %p150 = scmp.ne.s32.totalorder %s142, %s145
    %p151 = scmp.eq.s32.totalorder %s12, 0
    %p152 = por %p150, %p151
    %p153 = scmp.ne.s32.totalorder %s142, %s145
    %p154 = scmp.eq.s32.totalorder %s17, 1
    %p155 = por %p153, %p154
    %p156 = scmp.ne.s32.totalorder %s145, %s146
    %p157 = scmp.eq.s32.totalorder %s17, 0
    %p158 = por %p156, %p157
    %p159 = scmp.ne.s32.totalorder %s145, %s146
    %p160 = scmp.eq.s32.totalorder %s18, 1
    %p161 = por %p159, %p160
    %p163 = scmp.ne.s32.totalorder %s146, %s162
    %p164 = scmp.eq.s32.totalorder %s18, 0
    %p165 = por %p163, %p164
    %p166 = scmp.le.s32.totalorder 1, %s12
    %p167 = scmp.lt.s32.totalorder %s12, 3
    %p168 = pnand %p166, %p167
    %p169 = pneg %p168
    // Predicated region
    $region9: #{downblock_forward.2} parent=5 // pred_check
      _
    $region10: #{downblock_forward.2} parent=5 // pred_check_branch
      %171 = sbr.rel (%p168) target = $region12
    $region11: #{downblock_forward.2} parent=5 // pred_region
      %s172 = ssub.s32 %s12, 1
      // Predicated region
      $region13: #{downblock_forward.2} parent=11 // pred_check
        %p173 = pneg %p59
      $region14: #{downblock_forward.2} parent=11 // pred_check_branch
        %175 = sbr.rel (%p173) target = $region16
      $region15: #{downblock_forward.2} parent=11 // pred_region
        _
      $region16: #{downblock_forward.2} parent=11 // pred_fallthru
        _
      // Predicated region
      $region17: #{downblock_forward.2} parent=11 // pred_check
        %p176 = pneg %p80
      $region18: #{downblock_forward.2} parent=11 // pred_check_branch
        %178 = sbr.rel (%p176) target = $region20
      $region19: #{downblock_forward.2} parent=11 // pred_region
        _
      $region20: #{downblock_forward.2} parent=11 // pred_fallthru
        _
    $region12: #{downblock_forward.2} parent=5 // pred_fallthru
      _
    %p179 = scmp.lt.s32.totalorder %s12, 2
    // Predicated region
    $region21: #{downblock_forward.2} parent=5 // pred_check
      %p180 = pneg %p179
    $region22: #{downblock_forward.2} parent=5 // pred_check_branch
      %182 = sbr.rel (%p180) target = $region24
    $region23: #{downblock_forward.2} parent=5 // pred_region
      // Predicated region
      $region25: #{downblock_forward.2} parent=23 // pred_check
        %p183 = pneg %p32
      $region26: #{downblock_forward.2} parent=23 // pred_check_branch
        %185 = sbr.rel (%p183) target = $region28
      $region27: #{downblock_forward.2} parent=23 // pred_region
        %p186 = scmp.lt.s32.totalorder %s12, 1
        %s187 = scalar_select %p186, %s12, 1
        %s188 = smul.addr %s187, 4
        %s189 = smul.addr %s188, 8
        %s190 = scalar_lea.vmem %s0, %s189
      $region28: #{downblock_forward.2} parent=23 // pred_fallthru
        _
    $region24: #{downblock_forward.2} parent=5 // pred_fallthru
      _
    %p191 = scmp.le.s32.totalorder 1, %s12
    %p192 = scmp.lt.s32.totalorder %s12, 3
    %p193 = pnand %p191, %p192
    %p194 = pneg %p193
    // Predicated region
    $region29: #{downblock_forward.2} parent=5 // pred_check
      _
    $region30: #{downblock_forward.2} parent=5 // pred_check_branch
      %196 = sbr.rel (%p193) target = $region32
    $region31: #{downblock_forward.2} parent=5 // pred_region
      %s197 = ssub.s32 %s12, 1
      %p198 = scmp.lt.s32.totalorder %s17, 1
      %s199 = scalar_select %p198, %s17, 1
      %s200 = smul.addr %s199, 4
      %s201 = smul.addr %s200, 8
      %s202 = scalar_lea.vmem %s0, %s201
      %p203 = pneg %p38
      %p204 = pneg %p35
      %p205 = pneg %p59
      %p206 = pneg %p56
      %p207 = pneg %p80
      %p208 = pneg %p77
      %p209 = pneg %p106
      %p210 = pneg %p103
      %p211 = scmp.lt.s32.totalorder %s17, 1
      %s212 = scalar_select %p211, %s17, 1
      %s213 = smul.addr %s212, 4
      %s214 = smul.addr %s213, 8
      %s215 = scalar_lea.vmem %s3, %s214
      %p216 = pneg %p132
      %p217 = pneg %p129
      %p218 = scmp.lt.s32.totalorder %s17, 1
      %s219 = scalar_select %p218, %s17, 1
      %s220 = smul.addr %s219, 2
      %s221 = smul.addr %s220, 8
      %s222 = scalar_lea.vmem %s4, %s221
      %p223 = pneg %p158
      %p224 = pneg %p155
      %p225 = scmp.lt.s32.totalorder %s17, 1
      %s226 = scalar_select %p225, %s17, 1
      %s227 = smul.addr %s226, 2
      %s228 = smul.addr %s227, 8
      %s229 = scalar_lea.vmem %s5, %s228
      %p230 = scmp.lt.s32.totalorder %s17, 1
      %s231 = scalar_select %p230, %s17, 1
      %s232 = smul.addr %s231, 4
      %s233 = smul.addr %s232, 8
      %s234 = scalar_lea.vmem %s0, %s233
      %p235 = scmp.lt.s32.totalorder %s17, 1
      %s236 = scalar_select %p235, %s17, 1
      %s237 = smul.addr %s236, 4
      %s238 = smul.addr %s237, 8
      %s239 = scalar_lea.vmem %s3, %s238
      %p240 = scmp.lt.s32.totalorder %s17, 1
      %s241 = scalar_select %p240, %s17, 1
      %s242 = smul.addr %s241, 2
      %s243 = smul.addr %s242, 8
      %s244 = scalar_lea.vmem %s4, %s243
      %p245 = scmp.lt.s32.totalorder %s17, 1
      %s246 = scalar_select %p245, %s17, 1
      %s247 = smul.addr %s246, 2
      %s248 = smul.addr %s247, 8
      %s249 = scalar_lea.vmem %s5, %s248
      %v250 = vld [vmem:[%s1] sm:$0xff]
      %v251 = vld [vmem:[%s1 + $0x8] sm:$0xff]
      %v252 = vld [vmem:[%s1 + $0x10] sm:$0xff]
      %v253 = vld [vmem:[%s1 + $0x18] sm:$0xff]
      %v254 = vld [vmem:[%s2] sm:$0xff]
      %v255 = vld [vmem:[%s2 + $0x8] sm:$0xff]
      %v256 = vld [vmem:[%s234] sm:$0xff]
      %v257 = vld [vmem:[%s234 + $0x8] sm:$0xff]
      %v258 = vld [vmem:[%s234 + $0x10] sm:$0xff]
      %v259 = vld [vmem:[%s234 + $0x18] sm:$0xff]
      %v260 = vlaneseq
      %v261 = vand.u32 %v260, 127
      %v262 = vadd.s32 %v261, 128
      %vm263 = vcmp.lt.s32.totalorder %v261, 0
      %v264 = vsub.s32 0, %v261
      %v265 = vsel %vm263, %v264, %v261
      %v266 = vshrl.u32 %v265, 4
      %v267 = vand.u32 %v265, 15
      %v268 = vsub.s32 0, %v267
      %v269 = vsel %vm263, %v268, %v267
      %vm270 = vcmp.lt.s32.totalorder %v262, 0
      %v271 = vsub.s32 0, %v262
      %v272 = vsel %vm270, %v271, %v262
      %v273 = vshrl.u32 %v272, 4
      %v274 = vand.u32 %v272, 15
      %v275 = vsub.s32 0, %v274
      %v276 = vsel %vm270, %v275, %v274
      %vm277 = vcmp.ne.s32.totalorder %v269, 0
      %vm278 = vcmp.ne.s32.totalorder %v276, 0
      %vm279 = vcmp.lt.s32.totalorder %v269, 0
      %vm280 = vcmp.lt.s32.totalorder %v276, 0
      %vm281 = vmand %vm279, %vm277
      %vm282 = vmand %vm280, %vm278
      %v283 = vadd.s32 %v269, 16
      %v284 = vadd.s32 %v276, 16
      %v285 = vsel %vm281, %v283, %v269
      %v286 = vsel %vm282, %v284, %v276
      %287 = vrot.lane.b32.xlu0 %v256, 17
      %v288 = vpop.permute.xlu0 %287
      %289 = vrot.lane.b32.xlu0 %v258, 17
      %v290 = vpop.permute.xlu0 %289
      %291 = vrot.lane.b32.xlu0 %v257, 17
      %v292 = vpop.permute.xlu0 %291
      %293 = vrot.lane.b32.xlu0 %v259, 17
      %v294 = vpop.permute.xlu0 %293
      %vm295 = vcmp.lt.s32.totalorder %v261, 17
      %v296 = vsel %vm295, %v288, %v292
      %v297 = vsel %vm295, %v290, %v294
      %v298 = vsel %vm295, %v292, %v288
      %v299 = vsel %vm295, %v294, %v290
      %vm300 = vcmp.ge.s32.totalorder %v261, 16
      %vm301 = vcmp.ge.s32.totalorder %v262, 16
      %vm302 = vcmp.ge.s32.totalorder %v285, 1
      %vm303 = vcmp.ge.s32.totalorder %v286, 1
      %vm304 = vmand %vm300, %vm302
      %vm305 = vmand %vm301, %vm303
      %v306 = vsel %vm304, 1, 0
      %v307 = vsel %vm305, 1, 0
      %vm308 = vcmp.eq.s32.totalorder %v306, 1
      %vm309 = vcmp.eq.s32.totalorder %v307, 1
      %v310 = vsel %vm308, %v298, 0.0
      %v311 = vsel %vm309, %v296, 0.0
      %v312 = vsel %vm308, %v299, 0.0
      %v313 = vsel %vm309, %v297, 0.0
      %314 = vrot.lane.b32.xlu0 %v256, 16
      %v315 = vpop.permute.xlu0 %314
      %316 = vrot.lane.b32.xlu0 %v258, 16
      %v317 = vpop.permute.xlu0 %316
      %318 = vrot.lane.b32.xlu0 %v257, 16
      %v319 = vpop.permute.xlu0 %318
      %320 = vrot.lane.b32.xlu0 %v259, 16
      %v321 = vpop.permute.xlu0 %320
      %vm322 = vcmp.lt.s32.totalorder %v261, 16
      %v323 = vsel %vm322, %v315, %v319
      %v324 = vsel %vm322, %v317, %v321
      %v325 = vsel %vm322, %v319, %v315
      %v326 = vsel %vm322, %v321, %v317
      %v327 = vsel %vm300, 1, 0
      %v328 = vsel %vm301, 1, 0
      %vm329 = vcmp.eq.s32.totalorder %v327, 1
      %vm330 = vcmp.eq.s32.totalorder %v328, 1
      %v331 = vsel %vm329, %v325, 0.0
      %v332 = vsel %vm330, %v323, 0.0
      %v333 = vsel %vm329, %v326, 0.0
      %v334 = vsel %vm330, %v324, 0.0
      %335 = vrot.lane.b32.xlu0 %v256, 15
      %v336 = vpop.permute.xlu0 %335
      %337 = vrot.lane.b32.xlu0 %v258, 15
      %v338 = vpop.permute.xlu0 %337
      %339 = vrot.lane.b32.xlu0 %v257, 15
      %v340 = vpop.permute.xlu0 %339
      %341 = vrot.lane.b32.xlu0 %v259, 15
      %v342 = vpop.permute.xlu0 %341
      %vm343 = vcmp.lt.s32.totalorder %v261, 15
      %v344 = vsel %vm343, %v336, %v340
      %v345 = vsel %vm343, %v338, %v342
      %v346 = vsel %vm343, %v340, %v336
      %v347 = vsel %vm343, %v342, %v338
      %vm348 = vcmp.lt.s32.totalorder %v285, 15
      %vm349 = vcmp.lt.s32.totalorder %v286, 15
      %vm350 = vmand %vm300, %vm348
      %vm351 = vmand %vm301, %vm349
      %v352 = vsel %vm350, 1, 0
      %v353 = vsel %vm351, 1, 0
      %vm354 = vcmp.eq.s32.totalorder %v352, 1
      %vm355 = vcmp.eq.s32.totalorder %v353, 1
      %v356 = vsel %vm354, %v346, 0.0
      %v357 = vsel %vm355, %v344, 0.0
      %v358 = vsel %vm354, %v347, 0.0
      %v359 = vsel %vm355, %v345, 0.0
      %360 = vrot.lane.b32.xlu0 %v256, 1
      %v361 = vpop.permute.xlu0 %360
      %362 = vrot.lane.b32.xlu0 %v258, 1
      %v363 = vpop.permute.xlu0 %362
      %364 = vrot.lane.b32.xlu0 %v257, 1
      %v365 = vpop.permute.xlu0 %364
      %366 = vrot.lane.b32.xlu0 %v259, 1
      %v367 = vpop.permute.xlu0 %366
      %vm368 = vcmp.lt.s32.totalorder %v261, 1
      %v369 = vsel %vm368, %v361, %v365
      %v370 = vsel %vm368, %v363, %v367
      %v371 = vsel %vm368, %v365, %v361
      %v372 = vsel %vm368, %v367, %v363
      %v373 = vsel %vm302, 1, 0
      %v374 = vsel %vm303, 1, 0
      %vm375 = vcmp.eq.s32.totalorder %v373, 1
      %vm376 = vcmp.eq.s32.totalorder %v374, 1
      %v377 = vsel %vm375, %v371, 0.0
      %v378 = vsel %vm376, %v369, 0.0
      %v379 = vsel %vm375, %v372, 0.0
      %v380 = vsel %vm376, %v370, 0.0
      %381 = vrot.lane.b32.xlu0 %v256, 127
      %v382 = vpop.permute.xlu0 %381
      %383 = vrot.lane.b32.xlu0 %v258, 127
      %v384 = vpop.permute.xlu0 %383
      %385 = vrot.lane.b32.xlu0 %v257, 127
      %v386 = vpop.permute.xlu0 %385
      %387 = vrot.lane.b32.xlu0 %v259, 127
      %v388 = vpop.permute.xlu0 %387
      %vm389 = vcmp.lt.s32.totalorder %v261, 127
      %v390 = vsel %vm389, %v382, %v386
      %v391 = vsel %vm389, %v384, %v388
      %v392 = vsel %vm389, %v386, %v382
      %v393 = vsel %vm389, %v388, %v384
      %v394 = vsel %vm348, 1, 0
      %v395 = vsel %vm349, 1, 0
      %vm396 = vcmp.eq.s32.totalorder %v394, 1
      %vm397 = vcmp.eq.s32.totalorder %v395, 1
      %v398 = vsel %vm396, %v390, 0.0
      %v399 = vsel %vm397, %v392, 0.0
      %v400 = vsel %vm396, %v391, 0.0
      %v401 = vsel %vm397, %v393, 0.0
      %402 = vrot.lane.b32.xlu0 %v256, 113
      %v403 = vpop.permute.xlu0 %402
      %404 = vrot.lane.b32.xlu0 %v258, 113
      %v405 = vpop.permute.xlu0 %404
      %406 = vrot.lane.b32.xlu0 %v257, 113
      %v407 = vpop.permute.xlu0 %406
      %408 = vrot.lane.b32.xlu0 %v259, 113
      %v409 = vpop.permute.xlu0 %408
      %vm410 = vcmp.lt.s32.totalorder %v261, 113
      %v411 = vsel %vm410, %v403, %v407
      %v412 = vsel %vm410, %v405, %v409
      %v413 = vsel %vm410, %v407, %v403
      %v414 = vsel %vm410, %v409, %v405
      %vm415 = vcmp.lt.s32.totalorder %v261, 240
      %vm416 = vcmp.lt.s32.totalorder %v262, 240
      %vm417 = vmand %vm415, %vm302
      %vm418 = vmand %vm416, %vm303
      %v419 = vsel %vm417, 1, 0
      %v420 = vsel %vm418, 1, 0
      %vm421 = vcmp.eq.s32.totalorder %v419, 1
      %vm422 = vcmp.eq.s32.totalorder %v420, 1
      %v423 = vsel %vm421, %v411, 0.0
      %v424 = vsel %vm422, %v413, 0.0
      %v425 = vsel %vm421, %v412, 0.0
      %v426 = vsel %vm422, %v414, 0.0
      %427 = vrot.lane.b32.xlu0 %v256, 112
      %v428 = vpop.permute.xlu0 %427
      %429 = vrot.lane.b32.xlu0 %v258, 112
      %v430 = vpop.permute.xlu0 %429
      %431 = vrot.lane.b32.xlu0 %v257, 112
      %v432 = vpop.permute.xlu0 %431
      %433 = vrot.lane.b32.xlu0 %v259, 112
      %v434 = vpop.permute.xlu0 %433
      %vm435 = vcmp.lt.s32.totalorder %v261, 112
      %v436 = vsel %vm435, %v428, %v432
      %v437 = vsel %vm435, %v430, %v434
      %v438 = vsel %vm435, %v432, %v428
      %v439 = vsel %vm435, %v434, %v430
      %v440 = vsel %vm415, 1, 0
      %v441 = vsel %vm416, 1, 0
      %vm442 = vcmp.eq.s32.totalorder %v440, 1
      %vm443 = vcmp.eq.s32.totalorder %v441, 1
      %v444 = vsel %vm442, %v436, 0.0
      %v445 = vsel %vm443, %v438, 0.0
      %v446 = vsel %vm442, %v437, 0.0
      %v447 = vsel %vm443, %v439, 0.0
      %448 = vrot.lane.b32.xlu0 %v256, 111
      %v449 = vpop.permute.xlu0 %448
      %450 = vrot.lane.b32.xlu0 %v258, 111
      %v451 = vpop.permute.xlu0 %450
      %452 = vrot.lane.b32.xlu0 %v257, 111
      %v453 = vpop.permute.xlu0 %452
      %454 = vrot.lane.b32.xlu0 %v259, 111
      %v455 = vpop.permute.xlu0 %454
      %vm456 = vcmp.lt.s32.totalorder %v261, 111
      %v457 = vsel %vm456, %v449, %v453
      %v458 = vsel %vm456, %v451, %v455
      %v459 = vsel %vm456, %v453, %v449
      %v460 = vsel %vm456, %v455, %v451
      %vm461 = vmand %vm415, %vm348
      %vm462 = vmand %vm416, %vm349
      %v463 = vsel %vm461, 1, 0
      %v464 = vsel %vm462, 1, 0
      %vm465 = vcmp.eq.s32.totalorder %v463, 1
      %vm466 = vcmp.eq.s32.totalorder %v464, 1
      %v467 = vsel %vm465, %v457, 0.0
      %v468 = vsel %vm466, %v459, 0.0
      %v469 = vsel %vm465, %v458, 0.0
      %v470 = vsel %vm466, %v460, 0.0
      %vm471 = vcmask 130048
      %v473 = vsel %vm471, %v251, 0
      %v476 = vsel %vm471, %v253, 0
      %478 = vmatprep.subr.mxu0 %v311
      %479 = vmatpush1.msra.mxu0 %v310
      %480 = vmatprep.subr.mxu0 %v313
      %481 = vmatpush1.msra.mxu0 %v312
      %482 = vmatprep.subr.mxu0 %v332
      %483 = vmatpush1.msra.mxu0 %v331
      %484 = vmatprep.subr.mxu0 %v334
      %485 = vmatpush1.msra.mxu0 %v333
      %486 = vmatprep.subr.mxu0 %v357
      %487 = vmatpush1.msra.mxu0 %v356
      %488 = vmatprep.subr.mxu0 %v359
      %489 = vmatpush1.msra.mxu0 %v358
      %490 = vmatprep.subr.mxu0 %v378
      %491 = vmatpush1.msra.mxu0 %v377
      %492 = vmatprep.subr.mxu0 %v380
      %493 = vmatpush1.msra.mxu0 %v379
      %494 = vmatprep.subr.mxu0 %v257
      %495 = vmatpush1.msra.mxu0 %v256
      %496 = vmatprep.subr.mxu0 %v259
      %497 = vmatpush1.msra.mxu0 %v258
      %498 = vmatprep.subr.mxu0 %v399
      %499 = vmatpush1.msra.mxu0 %v398
      %500 = vmatprep.subr.mxu0 %v401
      %501 = vmatpush1.msra.mxu0 %v400
      %502 = vmatprep.subr.mxu0 %v424
      %503 = vmatpush1.msra.mxu0 %v423
      %504 = vmatprep.subr.mxu0 %v426
      %505 = vmatpush1.msra.mxu0 %v425
      %506 = vmatprep.subr.mxu0 %v445
      %507 = vmatpush1.msra.mxu0 %v444
      %508 = vmatprep.subr.mxu0 %v447
      %509 = vmatpush1.msra.mxu0 %v446
      %510 = vmatprep.subr.mxu0 %v468
      %511 = vmatpush1.msra.mxu0 %v467
      %512 = vmatprep.subr.mxu0 %v470
      %513 = vmatpush1.msra.mxu0 %v469
      %514 = vmatprep.subr.mxu0 0.0
      %515 = vmatpush1.msra.mxu0 0.0
      %516 = vmatprep.subr.mxu0 0.0
      %517 = vmatpush1.msra.mxu0 0.0
      %518 = vmatprep.subr.mxu0 0.0
      %519 = vmatpush1.msra.mxu0 0.0
      %520 = vmatprep.subr.mxu0 0.0
      %521 = vmatpush1.msra.mxu0 0.0
      %522 = vmatprep.subr.mxu0 0.0
      %523 = vmatpush1.msra.mxu0 0.0
      %524 = vmatprep.subr.mxu0 0.0
      %525 = vmatpush1.msra.mxu0 0.0
      %526 = vmatprep.subr.mxu0 0.0
      %527 = vmatpush1.msra.mxu0 0.0
      %528 = vmatprep.subr.mxu0 0.0
      %529 = vmatpush1.msra.mxu0 0.0
      %530 = vmatprep.subr.mxu0 0.0
      %531 = vmatpush1.msra.mxu0 0.0
      %532 = vmatprep.subr.mxu0 0.0
      %533 = vmatpush1.msra.mxu0 0.0
      %534 = vmatprep.subr.mxu0 0.0
      %535 = vmatpush1.msra.mxu0 0.0
      %536 = vmatprep.subr.mxu0 0.0
      %537 = vmatpush1.msra.mxu0 0.0
      %538 = vmatprep.subr.mxu0 0.0
      %539 = vmatpush1.msra.mxu0 0.0
      %540 = vmatprep.subr.mxu0 0.0
      %541 = vmatpush1.msra.mxu0 0.0
      %542 = vmatprep.mubr.f32.mxu0 %v473
      %543 = vmatmul.mubr.f32.gmra.mrb[0].mxu0 %v250
      %v544 = vpop.f32.mrb[0].mxu0
      %v545 = vadd.f32 0.0, %v544
      %v546 = vpop.f32.mrb[0].mxu0
      %v547 = vadd.f32 0.0, %v546
      %548 = vmatprep.mubr.f32.mxu0 %v476
      %549 = vmatmul.mubr.f32.gmra.mrb[0].mxu0 %v252
      %v550 = vpop.f32.mrb[0].mxu0
      %v551 = vadd.f32 0.0, %v550
      %v552 = vpop.f32.mrb[0].mxu0
      %v553 = vadd.f32 0.0, %v552
      %554 = vdwg.mxu0
      %v555 = vadd.f32 %v545, %v547
      %556 = vadd.xlane.f32.xlu0 %v555
      %v557 = vpop.xlane.xlu0 %556
      %v558 = vadd.f32 %v551, %v553
      %559 = vadd.xlane.f32.xlu0 %v558
      %v560 = vpop.xlane.xlu0 %559
      %v561 = vadd.f32 %v557, 0.0
      %v562 = vadd.f32 %v560, 0.0
      %v563 = vmul.f32 %v545, %v545
      %v564 = vmul.f32 %v547, %v547
      %v565 = vmul.f32 %v551, %v551
      %v566 = vmul.f32 %v553, %v553
      %v567 = vadd.f32 %v563, %v564
      %568 = vadd.xlane.f32.xlu0 %v567
      %v569 = vpop.xlane.xlu0 %568
      %v570 = vadd.f32 %v565, %v566
      %571 = vadd.xlane.f32.xlu0 %v570
      %v572 = vpop.xlane.xlu0 %571
      %v573 = vadd.f32 %v569, 0.0
      %v574 = vadd.f32 %v572, 0.0
      %576 = vset.pattern.permute.xlu0 0
      %577 = vperm.xlu0 %576, %v254
      %v578 = vpop.permute.xlu0 %577
      %581 = vset.pattern.permute.xlu0 0
      %582 = vperm.xlu0 %581, %v255
      %v583 = vpop.permute.xlu0 %582
      %v585 = vadd.f32 %v545, %v578
      %v586 = vadd.f32 %v547, %v578
      %v587 = vadd.f32 %v551, %v583
      %v588 = vadd.f32 %v553, %v583
      %589 = vst [vmem:[%s239] sm:$0xff] %v585
      %590 = vst [vmem:[%s239 + $0x8] sm:$0xff] %v586
      %591 = vst [vmem:[%s239 + $0x10] sm:$0xff] %v587
      %592 = vst [vmem:[%s239 + $0x18] sm:$0xff] %v588
      %vm593 = vcmask 7168
      %594 = vst.msk [vmem:[%s244] sm:$0xff] %vm593, %v561
      %595 = vst.msk [vmem:[%s244 + $0x8] sm:$0xff] %vm593, %v562
      %596 = vst.msk [vmem:[%s249] sm:$0xff] %vm593, %v573
      %597 = vst.msk [vmem:[%s249 + $0x8] sm:$0xff] %vm593, %v574
      %p598 = scmp.lt.s32.totalorder %s17, 1
      %s599 = scalar_select %p598, %s17, 1
      %s600 = smul.addr %s599, 4
      %s601 = smul.addr %s600, 8
      %s602 = scalar_lea.vmem %s3, %s601
      %p603 = scmp.lt.s32.totalorder %s17, 1
      %s604 = scalar_select %p603, %s17, 1
      %s605 = smul.addr %s604, 2
      %s606 = smul.addr %s605, 8
      %s607 = scalar_lea.vmem %s4, %s606
      %p608 = scmp.lt.s32.totalorder %s17, 1
      %s609 = scalar_select %p608, %s17, 1
      %s610 = smul.addr %s609, 2
      %s611 = smul.addr %s610, 8
      %s612 = scalar_lea.vmem %s5, %s611
      // Predicated region
      $region33: #{downblock_forward.2} parent=31 // pred_check
        %p613 = pneg %p103
      $region34: #{downblock_forward.2} parent=31 // pred_check_branch
        %615 = sbr.rel (%p613) target = $region36
      $region35: #{downblock_forward.2} parent=31 // pred_region
        _
      $region36: #{downblock_forward.2} parent=31 // pred_fallthru
        _
      // Predicated region
      $region37: #{downblock_forward.2} parent=31 // pred_check
        %p616 = pneg %p129
      $region38: #{downblock_forward.2} parent=31 // pred_check_branch
        %618 = sbr.rel (%p616) target = $region40
      $region39: #{downblock_forward.2} parent=31 // pred_region
        _
      $region40: #{downblock_forward.2} parent=31 // pred_fallthru
        _
      // Predicated region
      $region41: #{downblock_forward.2} parent=31 // pred_check
        %p619 = pneg %p155
      $region42: #{downblock_forward.2} parent=31 // pred_check_branch
        %621 = sbr.rel (%p619) target = $region44
      $region43: #{downblock_forward.2} parent=31 // pred_region
        _
      $region44: #{downblock_forward.2} parent=31 // pred_fallthru
        _
    $region32: #{downblock_forward.2} parent=5 // pred_fallthru
      _
    %p622 = scmp.le.s32.totalorder 2, %s12
    // Predicated region
    $region45: #{downblock_forward.2} parent=5 // pred_check
      %p623 = pneg %p622
    $region46: #{downblock_forward.2} parent=5 // pred_check_branch
      %625 = sbr.rel (%p623) target = $region48
    $region47: #{downblock_forward.2} parent=5 // pred_region
      %s626 = ssub.s32 %s12, 2
      // Predicated region
      $region49: #{downblock_forward.2} parent=47 // pred_check
        %p627 = pneg %p109
      $region50: #{downblock_forward.2} parent=47 // pred_check_branch
        %629 = sbr.rel (%p627) target = $region52
      $region51: #{downblock_forward.2} parent=47 // pred_region
        %p630 = scmp.lt.s32.totalorder %s18, 1
        %s631 = scalar_select %p630, %s18, 1
        %s632 = smul.addr %s631, 4
        %s633 = smul.addr %s632, 8
        %s634 = scalar_lea.vmem %s3, %s633
      $region52: #{downblock_forward.2} parent=47 // pred_fallthru
        _
      // Predicated region
      $region53: #{downblock_forward.2} parent=47 // pred_check
        %p635 = pneg %p135
      $region54: #{downblock_forward.2} parent=47 // pred_check_branch
        %637 = sbr.rel (%p635) target = $region56
      $region55: #{downblock_forward.2} parent=47 // pred_region
        %p638 = scmp.lt.s32.totalorder %s18, 1
        %s639 = scalar_select %p638, %s18, 1
        %s640 = smul.addr %s639, 2
        %s641 = smul.addr %s640, 8
        %s642 = scalar_lea.vmem %s4, %s641
      $region56: #{downblock_forward.2} parent=47 // pred_fallthru
        _
      // Predicated region
      $region57: #{downblock_forward.2} parent=47 // pred_check
        %p643 = pneg %p161
      $region58: #{downblock_forward.2} parent=47 // pred_check_branch
        %645 = sbr.rel (%p643) target = $region60
      $region59: #{downblock_forward.2} parent=47 // pred_region
        %p646 = scmp.lt.s32.totalorder %s18, 1
        %s647 = scalar_select %p646, %s18, 1
        %s648 = smul.addr %s647, 2
        %s649 = smul.addr %s648, 8
        %s650 = scalar_lea.vmem %s5, %s649
      $region60: #{downblock_forward.2} parent=47 // pred_fallthru
        _
    $region48: #{downblock_forward.2} parent=5 // pred_fallthru
      _
  $region6: #{downblock_forward.2} parent=0 // loop_footer
    %s16 = sadd.s32 1, %s12
  $region7: #{downblock_forward.2} parent=0 // loop_footer_branch
    %11 = sbr.rel target = $region3
  $region8: #{downblock_forward.2} parent=0 // loop_exit
    _

// kernel: downblock_forward.3
$region0: #{downblock_forward.3}
  #allocation0 [shape = 'u32[]', space=smem, size = 0x4, offset = 0x4, fixed_abs, tag = 'smem constant byte address 0x4 - core index']
  #allocation1 [shape = 'u32[144,128]{1,0:T(1,128)}', space=vmem, size = 0x12000, scoped, tag = 'internal scratch']
  %s0 = inlined_call_operand.vmem [shape: f32[2,16,256], index: 0, kind: input, shape index: {}]
  %s1 = inlined_call_operand.vmem [shape: f32[16,1], index: 1, kind: input, shape index: {}]
  %s2 = inlined_call_operand.vmem [shape: f32[16,1], index: 2, kind: input, shape index: {}]
  %s3 = inlined_call_operand.vmem [shape: f32[16,144], index: 3, kind: input, shape index: {}]
  %s4 = inlined_call_operand.vmem [shape: f32[16,1], index: 4, kind: input, shape index: {}]
  %s5 = inlined_call_operand.vmem [shape: f32[2,16,256], index: 5, kind: output, shape index: {0}]
  %s6 = inlined_call_operand.vmem [shape: f32[2,16,1], index: 6, kind: output, shape index: {1}]
  %s7 = inlined_call_operand.vmem [shape: f32[2,16,1], index: 7, kind: output, shape index: {2}]
  %8 = xla_tuple %s5, %s6, %s7
  %s9 = sld [smem:[#allocation0]]
  $region69: #{downblock_forward.3} parent=0
    _
  %s11 = ssub.s32 1, %s9
  %s12 = scalar_select 0, %s11, %s9
  loop: start=0, step=1, limit=4
  $region2: #{downblock_forward.3} parent=0 // loop_pre_header
    _
  $region3: #{downblock_forward.3} parent=0 // loop_header
    %s14 = sphi 0, %s18
    %p15 = scmp.ge.s32.totalorder %s14, 4
    %s24 = sphi 0, %s26
    %s27 = sphi 0, %s24
    %s28 = sphi 0, %s27
    %s44 = sphi 0, %s28
    %s48 = sphi 0, %s48
    %s50 = sphi 0, %s48
    %s51 = sphi 0, %s50
    %s65 = sphi 0, %s51
    %s69 = sphi 0, %s69
    %s71 = sphi 0, %s69
    %s72 = sphi 0, %s71
    %s86 = sphi 0, %s72
    %s90 = sphi 0, %s90
    %s92 = sphi 0, %s90
    %s93 = sphi 0, %s92
    %s107 = sphi 0, %s93
    %s111 = sphi 0, %s111
    %s113 = sphi 0, %s111
    %s114 = sphi 0, %s113
    %s128 = sphi 0, %s114
    %s134 = sphi 0, %s136
    %s137 = sphi 0, %s134
    %s138 = sphi 0, %s137
    %s154 = sphi 0, %s138
    %s160 = sphi 0, %s162
    %s163 = sphi 0, %s160
    %s164 = sphi 0, %s163
    %s180 = sphi 0, %s164
    %s186 = sphi 0, %s188
    %s189 = sphi 0, %s186
    %s190 = sphi 0, %s189
    %s206 = sphi 0, %s190
  $region4: #{downblock_forward.3} parent=0 // loop_header_branch
    %17 = sbr.rel (%p15) target = $region8
  $region5: #{downblock_forward.3} parent=0 // loop_body
    %s19 = ssub.s32 %s14, 1
    %s20 = ssub.s32 %s14, 2
    %s21 = sadd.s32 %s14, 1
    %s22 = ssub.s32 %s14, %s21
    %p23 = scmp.eq.s32.totalorder %s22, 0
    %s25 = sadd.s32 %s24, 1
    %s26 = scalar_select %p23, %s24, %s25
    %p29 = pneg %p23
    %p30 = scmp.eq.s32.totalorder %s14, 1
    %p31 = por %p29, %p30
    %p32 = scmp.ne.s32.totalorder %s24, %s27
    %p33 = scmp.eq.s32.totalorder %s14, 0
    %p34 = por %p32, %p33
    %p35 = scmp.ne.s32.totalorder %s24, %s27
    %p36 = scmp.eq.s32.totalorder %s19, 1
    %p37 = por %p35, %p36
    %p38 = scmp.ne.s32.totalorder %s27, %s28
    %p39 = scmp.eq.s32.totalorder %s19, 0
    %p40 = por %p38, %p39
    %p41 = scmp.ne.s32.totalorder %s27, %s28
    %p42 = scmp.eq.s32.totalorder %s20, 1
    %p43 = por %p41, %p42
    %p45 = scmp.ne.s32.totalorder %s28, %s44
    %p46 = scmp.eq.s32.totalorder %s20, 0
    %p47 = por %p45, %p46
    %s49 = sadd.s32 %s48, 1
    %p52 = scmp.eq.s32.totalorder %s14, 1
    %p53 = scmp.ne.s32.totalorder %s48, %s50
    %p54 = scmp.eq.s32.totalorder %s14, 0
    %p55 = por %p53, %p54
    %p56 = scmp.ne.s32.totalorder %s48, %s50
    %p57 = scmp.eq.s32.totalorder %s19, 1
    %p58 = por %p56, %p57
    %p59 = scmp.ne.s32.totalorder %s50, %s51
    %p60 = scmp.eq.s32.totalorder %s19, 0
    %p61 = por %p59, %p60
    %p62 = scmp.ne.s32.totalorder %s50, %s51
    %p63 = scmp.eq.s32.totalorder %s20, 1
    %p64 = por %p62, %p63
    %p66 = scmp.ne.s32.totalorder %s51, %s65
    %p67 = scmp.eq.s32.totalorder %s20, 0
    %p68 = por %p66, %p67
    %s70 = sadd.s32 %s69, 1
    %p73 = scmp.eq.s32.totalorder %s14, 1
    %p74 = scmp.ne.s32.totalorder %s69, %s71
    %p75 = scmp.eq.s32.totalorder %s14, 0
    %p76 = por %p74, %p75
    %p77 = scmp.ne.s32.totalorder %s69, %s71
    %p78 = scmp.eq.s32.totalorder %s19, 1
    %p79 = por %p77, %p78
    %p80 = scmp.ne.s32.totalorder %s71, %s72
    %p81 = scmp.eq.s32.totalorder %s19, 0
    %p82 = por %p80, %p81
    %p83 = scmp.ne.s32.totalorder %s71, %s72
    %p84 = scmp.eq.s32.totalorder %s20, 1
    %p85 = por %p83, %p84
    %p87 = scmp.ne.s32.totalorder %s72, %s86
    %p88 = scmp.eq.s32.totalorder %s20, 0
    %p89 = por %p87, %p88
    %s91 = sadd.s32 %s90, 1
    %p94 = scmp.eq.s32.totalorder %s14, 1
    %p95 = scmp.ne.s32.totalorder %s90, %s92
    %p96 = scmp.eq.s32.totalorder %s14, 0
    %p97 = por %p95, %p96
    %p98 = scmp.ne.s32.totalorder %s90, %s92
    %p99 = scmp.eq.s32.totalorder %s19, 1
    %p100 = por %p98, %p99
    %p101 = scmp.ne.s32.totalorder %s92, %s93
    %p102 = scmp.eq.s32.totalorder %s19, 0
    %p103 = por %p101, %p102
    %p104 = scmp.ne.s32.totalorder %s92, %s93
    %p105 = scmp.eq.s32.totalorder %s20, 1
    %p106 = por %p104, %p105
    %p108 = scmp.ne.s32.totalorder %s93, %s107
    %p109 = scmp.eq.s32.totalorder %s20, 0
    %p110 = por %p108, %p109
    %s112 = sadd.s32 %s111, 1
    %p115 = scmp.eq.s32.totalorder %s14, 1
    %p116 = scmp.ne.s32.totalorder %s111, %s113
    %p117 = scmp.eq.s32.totalorder %s14, 0
    %p118 = por %p116, %p117
    %p119 = scmp.ne.s32.totalorder %s111, %s113
    %p120 = scmp.eq.s32.totalorder %s19, 1
    %p121 = por %p119, %p120
    %p122 = scmp.ne.s32.totalorder %s113, %s114
    %p123 = scmp.eq.s32.totalorder %s19, 0
    %p124 = por %p122, %p123
    %p125 = scmp.ne.s32.totalorder %s113, %s114
    %p126 = scmp.eq.s32.totalorder %s20, 1
    %p127 = por %p125, %p126
    %p129 = scmp.ne.s32.totalorder %s114, %s128
    %p130 = scmp.eq.s32.totalorder %s20, 0
    %p131 = por %p129, %p130
    %s132 = ssub.s32 %s14, %s21
    %p133 = scmp.eq.s32.totalorder %s132, 0
    %s135 = sadd.s32 %s134, 1
    %s136 = scalar_select %p133, %s134, %s135
    %p139 = pneg %p133
    %p140 = scmp.eq.s32.totalorder %s14, 1
    %p141 = por %p139, %p140
    %p142 = scmp.ne.s32.totalorder %s134, %s137
    %p143 = scmp.eq.s32.totalorder %s14, 0
    %p144 = por %p142, %p143
    %p145 = scmp.ne.s32.totalorder %s134, %s137
    %p146 = scmp.eq.s32.totalorder %s19, 1
    %p147 = por %p145, %p146
    %p148 = scmp.ne.s32.totalorder %s137, %s138
    %p149 = scmp.eq.s32.totalorder %s19, 0
    %p150 = por %p148, %p149
    %p151 = scmp.ne.s32.totalorder %s137, %s138
    %p152 = scmp.eq.s32.totalorder %s20, 1
    %p153 = por %p151, %p152
    %p155 = scmp.ne.s32.totalorder %s138, %s154
    %p156 = scmp.eq.s32.totalorder %s20, 0
    %p157 = por %p155, %p156
    %s158 = ssub.s32 %s14, %s21
    %p159 = scmp.eq.s32.totalorder %s158, 0
    %s161 = sadd.s32 %s160, 1
    %s162 = scalar_select %p159, %s160, %s161
    %p165 = pneg %p159
    %p166 = scmp.eq.s32.totalorder %s14, 1
    %p167 = por %p165, %p166
    %p168 = scmp.ne.s32.totalorder %s160, %s163
    %p169 = scmp.eq.s32.totalorder %s14, 0
    %p170 = por %p168, %p169
    %p171 = scmp.ne.s32.totalorder %s160, %s163
    %p172 = scmp.eq.s32.totalorder %s19, 1
    %p173 = por %p171, %p172
    %p174 = scmp.ne.s32.totalorder %s163, %s164
    %p175 = scmp.eq.s32.totalorder %s19, 0
    %p176 = por %p174, %p175
    %p177 = scmp.ne.s32.totalorder %s163, %s164
    %p178 = scmp.eq.s32.totalorder %s20, 1
    %p179 = por %p177, %p178
    %p181 = scmp.ne.s32.totalorder %s164, %s180
    %p182 = scmp.eq.s32.totalorder %s20, 0
    %p183 = por %p181, %p182
    %s184 = ssub.s32 %s14, %s21
    %p185 = scmp.eq.s32.totalorder %s184, 0
    %s187 = sadd.s32 %s186, 1
    %s188 = scalar_select %p185, %s186, %s187
    %p191 = pneg %p185
    %p192 = scmp.eq.s32.totalorder %s14, 1
    %p193 = por %p191, %p192
    %p194 = scmp.ne.s32.totalorder %s186, %s189
    %p195 = scmp.eq.s32.totalorder %s14, 0
    %p196 = por %p194, %p195
    %p197 = scmp.ne.s32.totalorder %s186, %s189
    %p198 = scmp.eq.s32.totalorder %s19, 1
    %p199 = por %p197, %p198
    %p200 = scmp.ne.s32.totalorder %s189, %s190
    %p201 = scmp.eq.s32.totalorder %s19, 0
    %p202 = por %p200, %p201
    %p203 = scmp.ne.s32.totalorder %s189, %s190
    %p204 = scmp.eq.s32.totalorder %s20, 1
    %p205 = por %p203, %p204
    %p207 = scmp.ne.s32.totalorder %s190, %s206
    %p208 = scmp.eq.s32.totalorder %s20, 0
    %p209 = por %p207, %p208
    %p210 = scmp.le.s32.totalorder 1, %s14
    %p211 = scmp.lt.s32.totalorder %s14, 3
    %p212 = pnand %p210, %p211
    %p213 = pneg %p212
    // Predicated region
    $region9: #{downblock_forward.3} parent=5 // pred_check
      _
    $region10: #{downblock_forward.3} parent=5 // pred_check_branch
      %215 = sbr.rel (%p212) target = $region12
    $region11: #{downblock_forward.3} parent=5 // pred_region
      %s216 = ssub.s32 %s14, 1
      // Predicated region
      $region13: #{downblock_forward.3} parent=11 // pred_check
        %p217 = pneg %p61
      $region14: #{downblock_forward.3} parent=11 // pred_check_branch
        %219 = sbr.rel (%p217) target = $region16
      $region15: #{downblock_forward.3} parent=11 // pred_region
        _
      $region16: #{downblock_forward.3} parent=11 // pred_fallthru
        _
      // Predicated region
      $region17: #{downblock_forward.3} parent=11 // pred_check
        %p220 = pneg %p82
      $region18: #{downblock_forward.3} parent=11 // pred_check_branch
        %222 = sbr.rel (%p220) target = $region20
      $region19: #{downblock_forward.3} parent=11 // pred_region
        _
      $region20: #{downblock_forward.3} parent=11 // pred_fallthru
        _
      // Predicated region
      $region21: #{downblock_forward.3} parent=11 // pred_check
        %p223 = pneg %p103
      $region22: #{downblock_forward.3} parent=11 // pred_check_branch
        %225 = sbr.rel (%p223) target = $region24
      $region23: #{downblock_forward.3} parent=11 // pred_region
        _
      $region24: #{downblock_forward.3} parent=11 // pred_fallthru
        _
      // Predicated region
      $region25: #{downblock_forward.3} parent=11 // pred_check
        %p226 = pneg %p124
      $region26: #{downblock_forward.3} parent=11 // pred_check_branch
        %228 = sbr.rel (%p226) target = $region28
      $region27: #{downblock_forward.3} parent=11 // pred_region
        _
      $region28: #{downblock_forward.3} parent=11 // pred_fallthru
        _
    $region12: #{downblock_forward.3} parent=5 // pred_fallthru
      _
    %p229 = scmp.lt.s32.totalorder %s14, 2
    // Predicated region
    $region29: #{downblock_forward.3} parent=5 // pred_check
      %p230 = pneg %p229
    $region30: #{downblock_forward.3} parent=5 // pred_check_branch
      %232 = sbr.rel (%p230) target = $region32
    $region31: #{downblock_forward.3} parent=5 // pred_region
      // Predicated region
      $region33: #{downblock_forward.3} parent=31 // pred_check
        %p233 = pneg %p34
      $region34: #{downblock_forward.3} parent=31 // pred_check_branch
        %235 = sbr.rel (%p233) target = $region36
      $region35: #{downblock_forward.3} parent=31 // pred_region
        %p236 = scmp.lt.s32.totalorder %s14, 1
        %s237 = scalar_select %p236, %s14, 1
        %s238 = smul.addr %s237, 4
        %s239 = smul.addr %s238, 8
        %s240 = scalar_lea.vmem %s0, %s239
      $region36: #{downblock_forward.3} parent=31 // pred_fallthru
        _
    $region32: #{downblock_forward.3} parent=5 // pred_fallthru
      _
    %p241 = scmp.le.s32.totalorder 1, %s14
    %p242 = scmp.lt.s32.totalorder %s14, 3
    %p243 = pnand %p241, %p242
    %p244 = pneg %p243
    // Predicated region
    $region37: #{downblock_forward.3} parent=5 // pred_check
      _
    $region38: #{downblock_forward.3} parent=5 // pred_check_branch
      %246 = sbr.rel (%p243) target = $region40
    $region39: #{downblock_forward.3} parent=5 // pred_region
      %s247 = ssub.s32 %s14, 1
      %p248 = scmp.lt.s32.totalorder %s19, 1
      %s249 = scalar_select %p248, %s19, 1
      %s250 = smul.addr %s249, 4
      %s251 = smul.addr %s250, 8
      %s252 = scalar_lea.vmem %s0, %s251
      %p253 = pneg %p40
      %p254 = pneg %p37
      %p255 = pneg %p61
      %p256 = pneg %p58
      %p257 = pneg %p82
      %p258 = pneg %p79
      %p259 = pneg %p103
      %p260 = pneg %p100
      %p261 = pneg %p124
      %p262 = pneg %p121
      %p263 = pneg %p150
      %p264 = pneg %p147
      %p265 = scmp.lt.s32.totalorder %s19, 1
      %s266 = scalar_select %p265, %s19, 1
      %s267 = smul.addr %s266, 4
      %s268 = smul.addr %s267, 8
      %s269 = scalar_lea.vmem %s5, %s268
      %p270 = pneg %p176
      %p271 = pneg %p173
      %p272 = scmp.lt.s32.totalorder %s19, 1
      %s273 = scalar_select %p272, %s19, 1
      %s274 = smul.addr %s273, 2
      %s275 = smul.addr %s274, 8
      %s276 = scalar_lea.vmem %s6, %s275
      %p277 = pneg %p202
      %p278 = pneg %p199
      %p279 = scmp.lt.s32.totalorder %s19, 1
      %s280 = scalar_select %p279, %s19, 1
      %s281 = smul.addr %s280, 2
      %s282 = smul.addr %s281, 8
      %s283 = scalar_lea.vmem %s7, %s282
      %p284 = scmp.lt.s32.totalorder %s19, 1
      %s285 = scalar_select %p284, %s19, 1
      %s286 = smul.addr %s285, 4
      %s287 = smul.addr %s286, 8
      %s288 = scalar_lea.vmem %s0, %s287
      %p289 = scmp.lt.s32.totalorder %s19, 1
      %s290 = scalar_select %p289, %s19, 1
      %s291 = smul.addr %s290, 4
      %s292 = smul.addr %s291, 8
      %s293 = scalar_lea.vmem %s5, %s292
      %p294 = scmp.lt.s32.totalorder %s19, 1
      %s295 = scalar_select %p294, %s19, 1
      %s296 = smul.addr %s295, 2
      %s297 = smul.addr %s296, 8
      %s298 = scalar_lea.vmem %s6, %s297
      %p299 = scmp.lt.s32.totalorder %s19, 1
      %s300 = scalar_select %p299, %s19, 1
      %s301 = smul.addr %s300, 2
      %s302 = smul.addr %s301, 8
      %s303 = scalar_lea.vmem %s7, %s302
      %v304 = vld [vmem:[%s1] sm:$0xff]
      %v305 = vld [vmem:[%s1 + $0x8] sm:$0xff]
      %v306 = vld [vmem:[%s2] sm:$0xff]
      %v307 = vld [vmem:[%s2 + $0x8] sm:$0xff]
      %v308 = vld [vmem:[%s3] sm:$0xff]
      %v309 = vld [vmem:[%s3 + $0x8] sm:$0xff]
      %v310 = vld [vmem:[%s3 + $0x10] sm:$0xff]
      %v311 = vld [vmem:[%s3 + $0x18] sm:$0xff]
      %v312 = vld [vmem:[%s4] sm:$0xff]
      %v313 = vld [vmem:[%s4 + $0x8] sm:$0xff]
      %v314 = vld [vmem:[%s288] sm:$0xff]
      %v315 = vld [vmem:[%s288 + $0x8] sm:$0xff]
      %v316 = vld [vmem:[%s288 + $0x10] sm:$0xff]
      %v317 = vld [vmem:[%s288 + $0x18] sm:$0xff]
      %319 = vset.pattern.permute.xlu0 0
      %320 = vperm.xlu0 %319, %v304
      %v321 = vpop.permute.xlu0 %320
      %324 = vset.pattern.permute.xlu0 0
      %325 = vperm.xlu0 %324, %v305
      %v326 = vpop.permute.xlu0 %325
      %v328 = vmul.f32 %v314, %v321
      %v329 = vmul.f32 %v315, %v321
      %v330 = vmul.f32 %v316, %v326
      %v331 = vmul.f32 %v317, %v326
      %333 = vset.pattern.permute.xlu0 0
      %334 = vperm.xlu0 %333, %v306
      %v335 = vpop.permute.xlu0 %334
      %338 = vset.pattern.permute.xlu0 0
      %339 = vperm.xlu0 %338, %v307
      %v340 = vpop.permute.xlu0 %339
      %v342 = vadd.f32 %v328, %v335
      %v343 = vadd.f32 %v329, %v335
      %v344 = vadd.f32 %v330, %v340
      %v345 = vadd.f32 %v331, %v340
      %v346 = vmax.f32 %v342, 0.0
      %v347 = vmax.f32 %v343, 0.0
      %v348 = vmax.f32 %v344, 0.0
      %v349 = vmax.f32 %v345, 0.0
      %v350 = vlaneseq
      %v351 = vand.u32 %v350, 127
      %v352 = vadd.s32 %v351, 128
      %vm353 = vcmp.lt.s32.totalorder %v351, 0
      %v354 = vsub.s32 0, %v351
      %v355 = vsel %vm353, %v354, %v351
      %v356 = vshrl.u32 %v355, 4
      %v357 = vand.u32 %v355, 15
      %v358 = vsub.s32 0, %v357
      %v359 = vsel %vm353, %v358, %v357
      %vm360 = vcmp.lt.s32.totalorder %v352, 0
      %v361 = vsub.s32 0, %v352
      %v362 = vsel %vm360, %v361, %v352
      %v363 = vshrl.u32 %v362, 4
      %v364 = vand.u32 %v362, 15
      %v365 = vsub.s32 0, %v364
      %v366 = vsel %vm360, %v365, %v364
      %vm367 = vcmp.ne.s32.totalorder %v359, 0
      %vm368 = vcmp.ne.s32.totalorder %v366, 0
      %vm369 = vcmp.lt.s32.totalorder %v359, 0
      %vm370 = vcmp.lt.s32.totalorder %v366, 0
      %vm371 = vmand %vm369, %vm367
      %vm372 = vmand %vm370, %vm368
      %v373 = vadd.s32 %v359, 16
      %v374 = vadd.s32 %v366, 16
      %v375 = vsel %vm371, %v373, %v359
      %v376 = vsel %vm372, %v374, %v366
      %377 = vrot.lane.b32.xlu0 %v346, 17
      %v378 = vpop.permute.xlu0 %377
      %379 = vrot.lane.b32.xlu0 %v348, 17
      %v380 = vpop.permute.xlu0 %379
      %381 = vrot.lane.b32.xlu0 %v347, 17
      %v382 = vpop.permute.xlu0 %381
      %383 = vrot.lane.b32.xlu0 %v349, 17
      %v384 = vpop.permute.xlu0 %383
      %vm385 = vcmp.lt.s32.totalorder %v351, 17
      %v386 = vsel %vm385, %v378, %v382
      %v387 = vsel %vm385, %v380, %v384
      %v388 = vsel %vm385, %v382, %v378
      %v389 = vsel %vm385, %v384, %v380
      %vm390 = vcmp.ge.s32.totalorder %v351, 16
      %vm391 = vcmp.ge.s32.totalorder %v352, 16
      %vm392 = vcmp.ge.s32.totalorder %v375, 1
      %vm393 = vcmp.ge.s32.totalorder %v376, 1
      %vm394 = vmand %vm390, %vm392
      %vm395 = vmand %vm391, %vm393
      %v396 = vsel %vm394, 1, 0
      %v397 = vsel %vm395, 1, 0
      %vm398 = vcmp.eq.s32.totalorder %v396, 1
      %vm399 = vcmp.eq.s32.totalorder %v397, 1
      %v400 = vsel %vm398, %v388, 0.0
      %v401 = vsel %vm399, %v386, 0.0
      %v402 = vsel %vm398, %v389, 0.0
      %v403 = vsel %vm399, %v387, 0.0
      %404 = vrot.lane.b32.xlu0 %v346, 16
      %v405 = vpop.permute.xlu0 %404
      %406 = vrot.lane.b32.xlu0 %v348, 16
      %v407 = vpop.permute.xlu0 %406
      %408 = vrot.lane.b32.xlu0 %v347, 16
      %v409 = vpop.permute.xlu0 %408
      %410 = vrot.lane.b32.xlu0 %v349, 16
      %v411 = vpop.permute.xlu0 %410
      %vm412 = vcmp.lt.s32.totalorder %v351, 16
      %v413 = vsel %vm412, %v405, %v409
      %v414 = vsel %vm412, %v407, %v411
      %v415 = vsel %vm412, %v409, %v405
      %v416 = vsel %vm412, %v411, %v407
      %v417 = vsel %vm390, 1, 0
      %v418 = vsel %vm391, 1, 0
      %vm419 = vcmp.eq.s32.totalorder %v417, 1
      %vm420 = vcmp.eq.s32.totalorder %v418, 1
      %v421 = vsel %vm419, %v415, 0.0
      %v422 = vsel %vm420, %v413, 0.0
      %v423 = vsel %vm419, %v416, 0.0
      %v424 = vsel %vm420, %v414, 0.0
      %425 = vrot.lane.b32.xlu0 %v346, 15
      %v426 = vpop.permute.xlu0 %425
      %427 = vrot.lane.b32.xlu0 %v348, 15
      %v428 = vpop.permute.xlu0 %427
      %429 = vrot.lane.b32.xlu0 %v347, 15
      %v430 = vpop.permute.xlu0 %429
      %431 = vrot.lane.b32.xlu0 %v349, 15
      %v432 = vpop.permute.xlu0 %431
      %vm433 = vcmp.lt.s32.totalorder %v351, 15
      %v434 = vsel %vm433, %v426, %v430
      %v435 = vsel %vm433, %v428, %v432
      %v436 = vsel %vm433, %v430, %v426
      %v437 = vsel %vm433, %v432, %v428
      %vm438 = vcmp.lt.s32.totalorder %v375, 15
      %vm439 = vcmp.lt.s32.totalorder %v376, 15
      %vm440 = vmand %vm390, %vm438
      %vm441 = vmand %vm391, %vm439
      %v442 = vsel %vm440, 1, 0
      %v443 = vsel %vm441, 1, 0
      %vm444 = vcmp.eq.s32.totalorder %v442, 1
      %vm445 = vcmp.eq.s32.totalorder %v443, 1
      %v446 = vsel %vm444, %v436, 0.0
      %v447 = vsel %vm445, %v434, 0.0
      %v448 = vsel %vm444, %v437, 0.0
      %v449 = vsel %vm445, %v435, 0.0
      %450 = vrot.lane.b32.xlu0 %v346, 1
      %v451 = vpop.permute.xlu0 %450
      %452 = vrot.lane.b32.xlu0 %v348, 1
      %v453 = vpop.permute.xlu0 %452
      %454 = vrot.lane.b32.xlu0 %v347, 1
      %v455 = vpop.permute.xlu0 %454
      %456 = vrot.lane.b32.xlu0 %v349, 1
      %v457 = vpop.permute.xlu0 %456
      %vm458 = vcmp.lt.s32.totalorder %v351, 1
      %v459 = vsel %vm458, %v451, %v455
      %v460 = vsel %vm458, %v453, %v457
      %v461 = vsel %vm458, %v455, %v451
      %v462 = vsel %vm458, %v457, %v453
      %v463 = vsel %vm392, 1, 0
      %v464 = vsel %vm393, 1, 0
      %vm465 = vcmp.eq.s32.totalorder %v463, 1
      %vm466 = vcmp.eq.s32.totalorder %v464, 1
      %v467 = vsel %vm465, %v461, 0.0
      %v468 = vsel %vm466, %v459, 0.0
      %v469 = vsel %vm465, %v462, 0.0
      %v470 = vsel %vm466, %v460, 0.0
      %471 = vrot.lane.b32.xlu0 %v346, 127
      %v472 = vpop.permute.xlu0 %471
      %473 = vrot.lane.b32.xlu0 %v348, 127
      %v474 = vpop.permute.xlu0 %473
      %475 = vrot.lane.b32.xlu0 %v347, 127
      %v476 = vpop.permute.xlu0 %475
      %477 = vrot.lane.b32.xlu0 %v349, 127
      %v478 = vpop.permute.xlu0 %477
      %vm479 = vcmp.lt.s32.totalorder %v351, 127
      %v480 = vsel %vm479, %v472, %v476
      %v481 = vsel %vm479, %v474, %v478
      %v482 = vsel %vm479, %v476, %v472
      %v483 = vsel %vm479, %v478, %v474
      %v484 = vsel %vm438, 1, 0
      %v485 = vsel %vm439, 1, 0
      %vm486 = vcmp.eq.s32.totalorder %v484, 1
      %vm487 = vcmp.eq.s32.totalorder %v485, 1
      %v488 = vsel %vm486, %v480, 0.0
      %v489 = vsel %vm487, %v482, 0.0
      %v490 = vsel %vm486, %v481, 0.0
      %v491 = vsel %vm487, %v483, 0.0
      %492 = vrot.lane.b32.xlu0 %v346, 113
      %v493 = vpop.permute.xlu0 %492
      %494 = vrot.lane.b32.xlu0 %v348, 113
      %v495 = vpop.permute.xlu0 %494
      %496 = vrot.lane.b32.xlu0 %v347, 113
      %v497 = vpop.permute.xlu0 %496
      %498 = vrot.lane.b32.xlu0 %v349, 113
      %v499 = vpop.permute.xlu0 %498
      %vm500 = vcmp.lt.s32.totalorder %v351, 113
      %v501 = vsel %vm500, %v493, %v497
      %v502 = vsel %vm500, %v495, %v499
      %v503 = vsel %vm500, %v497, %v493
      %v504 = vsel %vm500, %v499, %v495
      %vm505 = vcmp.lt.s32.totalorder %v351, 240
      %vm506 = vcmp.lt.s32.totalorder %v352, 240
      %vm507 = vmand %vm505, %vm392
      %vm508 = vmand %vm506, %vm393
      %v509 = vsel %vm507, 1, 0
      %v510 = vsel %vm508, 1, 0
      %vm511 = vcmp.eq.s32.totalorder %v509, 1
      %vm512 = vcmp.eq.s32.totalorder %v510, 1
      %v513 = vsel %vm511, %v501, 0.0
      %v514 = vsel %vm512, %v503, 0.0
      %v515 = vsel %vm511, %v502, 0.0
      %v516 = vsel %vm512, %v504, 0.0
      %517 = vrot.lane.b32.xlu0 %v346, 112
      %v518 = vpop.permute.xlu0 %517
      %519 = vrot.lane.b32.xlu0 %v348, 112
      %v520 = vpop.permute.xlu0 %519
      %521 = vrot.lane.b32.xlu0 %v347, 112
      %v522 = vpop.permute.xlu0 %521
      %523 = vrot.lane.b32.xlu0 %v349, 112
      %v524 = vpop.permute.xlu0 %523
      %vm525 = vcmp.lt.s32.totalorder %v351, 112
      %v526 = vsel %vm525, %v518, %v522
      %v527 = vsel %vm525, %v520, %v524
      %v528 = vsel %vm525, %v522, %v518
      %v529 = vsel %vm525, %v524, %v520
      %v530 = vsel %vm505, 1, 0
      %v531 = vsel %vm506, 1, 0
      %vm532 = vcmp.eq.s32.totalorder %v530, 1
      %vm533 = vcmp.eq.s32.totalorder %v531, 1
      %v534 = vsel %vm532, %v526, 0.0
      %v535 = vsel %vm533, %v528, 0.0
      %v536 = vsel %vm532, %v527, 0.0
      %v537 = vsel %vm533, %v529, 0.0
      %538 = vrot.lane.b32.xlu0 %v346, 111
      %v539 = vpop.permute.xlu0 %538
      %540 = vrot.lane.b32.xlu0 %v348, 111
      %v541 = vpop.permute.xlu0 %540
      %542 = vrot.lane.b32.xlu0 %v347, 111
      %v543 = vpop.permute.xlu0 %542
      %544 = vrot.lane.b32.xlu0 %v349, 111
      %v545 = vpop.permute.xlu0 %544
      %vm546 = vcmp.lt.s32.totalorder %v351, 111
      %v547 = vsel %vm546, %v539, %v543
      %v548 = vsel %vm546, %v541, %v545
      %v549 = vsel %vm546, %v543, %v539
      %v550 = vsel %vm546, %v545, %v541
      %vm551 = vmand %vm505, %vm438
      %vm552 = vmand %vm506, %vm439
      %v553 = vsel %vm551, 1, 0
      %v554 = vsel %vm552, 1, 0
      %vm555 = vcmp.eq.s32.totalorder %v553, 1
      %vm556 = vcmp.eq.s32.totalorder %v554, 1
      %v557 = vsel %vm555, %v547, 0.0
      %v558 = vsel %vm556, %v549, 0.0
      %v559 = vsel %vm555, %v548, 0.0
      %v560 = vsel %vm556, %v550, 0.0
      %vm561 = vcmask 130048
      %v563 = vsel %vm561, %v309, 0
      %v566 = vsel %vm561, %v311, 0
      %568 = vmatprep.subr.mxu0 %v401
      %569 = vmatpush1.msra.mxu0 %v400
      %570 = vmatprep.subr.mxu0 %v403
      %571 = vmatpush1.msra.mxu0 %v402
      %572 = vmatprep.subr.mxu0 %v422
      %573 = vmatpush1.msra.mxu0 %v421
      %574 = vmatprep.subr.mxu0 %v424
      %575 = vmatpush1.msra.mxu0 %v423
      %576 = vmatprep.subr.mxu0 %v447
      %577 = vmatpush1.msra.mxu0 %v446
      %578 = vmatprep.subr.mxu0 %v449
      %579 = vmatpush1.msra.mxu0 %v448
      %580 = vmatprep.subr.mxu0 %v468
      %581 = vmatpush1.msra.mxu0 %v467
      %582 = vmatprep.subr.mxu0 %v470
      %583 = vmatpush1.msra.mxu0 %v469
      %584 = vmatprep.subr.mxu0 %v347
      %585 = vmatpush1.msra.mxu0 %v346
      %586 = vmatprep.subr.mxu0 %v349
      %587 = vmatpush1.msra.mxu0 %v348
      %588 = vmatprep.subr.mxu0 %v489
      %589 = vmatpush1.msra.mxu0 %v488
      %590 = vmatprep.subr.mxu0 %v491
      %591 = vmatpush1.msra.mxu0 %v490
      %592 = vmatprep.subr.mxu0 %v514
      %593 = vmatpush1.msra.mxu0 %v513
      %594 = vmatprep.subr.mxu0 %v516
      %595 = vmatpush1.msra.mxu0 %v515
      %596 = vmatprep.subr.mxu0 %v535
      %597 = vmatpush1.msra.mxu0 %v534
      %598 = vmatprep.subr.mxu0 %v537
      %599 = vmatpush1.msra.mxu0 %v536
      %600 = vmatprep.subr.mxu0 %v558
      %601 = vmatpush1.msra.mxu0 %v557
      %602 = vmatprep.subr.mxu0 %v560
      %603 = vmatpush1.msra.mxu0 %v559
      %604 = vmatprep.subr.mxu0 0.0
      %605 = vmatpush1.msra.mxu0 0.0
      %606 = vmatprep.subr.mxu0 0.0
      %607 = vmatpush1.msra.mxu0 0.0
      %608 = vmatprep.subr.mxu0 0.0
      %609 = vmatpush1.msra.mxu0 0.0
      %610 = vmatprep.subr.mxu0 0.0
      %611 = vmatpush1.msra.mxu0 0.0
      %612 = vmatprep.subr.mxu0 0.0
      %613 = vmatpush1.msra.mxu0 0.0
      %614 = vmatprep.subr.mxu0 0.0
      %615 = vmatpush1.msra.mxu0 0.0
      %616 = vmatprep.subr.mxu0 0.0
      %617 = vmatpush1.msra.mxu0 0.0
      %618 = vmatprep.subr.mxu0 0.0
      %619 = vmatpush1.msra.mxu0 0.0
      %620 = vmatprep.subr.mxu0 0.0
      %621 = vmatpush1.msra.mxu0 0.0
      %622 = vmatprep.subr.mxu0 0.0
      %623 = vmatpush1.msra.mxu0 0.0
      %624 = vmatprep.subr.mxu0 0.0
      %625 = vmatpush1.msra.mxu0 0.0
      %626 = vmatprep.subr.mxu0 0.0
      %627 = vmatpush1.msra.mxu0 0.0
      %628 = vmatprep.subr.mxu0 0.0
      %629 = vmatpush1.msra.mxu0 0.0
      %630 = vmatprep.subr.mxu0 0.0
      %631 = vmatpush1.msra.mxu0 0.0
      %632 = vmatprep.mubr.f32.mxu0 %v563
      %633 = vmatmul.mubr.f32.gmra.mrb[0].mxu0 %v308
      %v634 = vpop.f32.mrb[0].mxu0
      %v635 = vadd.f32 0.0, %v634
      %v636 = vpop.f32.mrb[0].mxu0
      %v637 = vadd.f32 0.0, %v636
      %638 = vmatprep.mubr.f32.mxu0 %v566
      %639 = vmatmul.mubr.f32.gmra.mrb[0].mxu0 %v310
      %v640 = vpop.f32.mrb[0].mxu0
      %v641 = vadd.f32 0.0, %v640
      %v642 = vpop.f32.mrb[0].mxu0
      %v643 = vadd.f32 0.0, %v642
      %644 = vdwg.mxu0
      %v645 = vadd.f32 %v635, %v637
      %646 = vadd.xlane.f32.xlu0 %v645
      %v647 = vpop.xlane.xlu0 %646
      %v648 = vadd.f32 %v641, %v643
      %649 = vadd.xlane.f32.xlu0 %v648
      %v650 = vpop.xlane.xlu0 %649
      %v651 = vadd.f32 %v647, 0.0
      %v652 = vadd.f32 %v650, 0.0
      %v653 = vmul.f32 %v635, %v635
      %v654 = vmul.f32 %v637, %v637
      %v655 = vmul.f32 %v641, %v641
      %v656 = vmul.f32 %v643, %v643
      %v657 = vadd.f32 %v653, %v654
      %658 = vadd.xlane.f32.xlu0 %v657
      %v659 = vpop.xlane.xlu0 %658
      %v660 = vadd.f32 %v655, %v656
      %661 = vadd.xlane.f32.xlu0 %v660
      %v662 = vpop.xlane.xlu0 %661
      %v663 = vadd.f32 %v659, 0.0
      %v664 = vadd.f32 %v662, 0.0
      %666 = vset.pattern.permute.xlu0 0
      %667 = vperm.xlu0 %666, %v312
      %v668 = vpop.permute.xlu0 %667
      %671 = vset.pattern.permute.xlu0 0
      %672 = vperm.xlu0 %671, %v313
      %v673 = vpop.permute.xlu0 %672
      %v675 = vadd.f32 %v635, %v668
      %v676 = vadd.f32 %v637, %v668
      %v677 = vadd.f32 %v641, %v673
      %v678 = vadd.f32 %v643, %v673
      %679 = vst [vmem:[%s293] sm:$0xff] %v675
      %680 = vst [vmem:[%s293 + $0x8] sm:$0xff] %v676
      %681 = vst [vmem:[%s293 + $0x10] sm:$0xff] %v677
      %682 = vst [vmem:[%s293 + $0x18] sm:$0xff] %v678
      %vm683 = vcmask 7168
      %684 = vst.msk [vmem:[%s298] sm:$0xff] %vm683, %v651
      %685 = vst.msk [vmem:[%s298 + $0x8] sm:$0xff] %vm683, %v652
      %686 = vst.msk [vmem:[%s303] sm:$0xff] %vm683, %v663
      %687 = vst.msk [vmem:[%s303 + $0x8] sm:$0xff] %vm683, %v664
      %p688 = scmp.lt.s32.totalorder %s19, 1
      %s689 = scalar_select %p688, %s19, 1
      %s690 = smul.addr %s689, 4
      %s691 = smul.addr %s690, 8
      %s692 = scalar_lea.vmem %s5, %s691
      %p693 = scmp.lt.s32.totalorder %s19, 1
      %s694 = scalar_select %p693, %s19, 1
      %s695 = smul.addr %s694, 2
      %s696 = smul.addr %s695, 8
      %s697 = scalar_lea.vmem %s6, %s696
      %p698 = scmp.lt.s32.totalorder %s19, 1
      %s699 = scalar_select %p698, %s19, 1
      %s700 = smul.addr %s699, 2
      %s701 = smul.addr %s700, 8
      %s702 = scalar_lea.vmem %s7, %s701
      // Predicated region
      $region41: #{downblock_forward.3} parent=39 // pred_check
        %p703 = pneg %p147
      $region42: #{downblock_forward.3} parent=39 // pred_check_branch
        %705 = sbr.rel (%p703) target = $region44
      $region43: #{downblock_forward.3} parent=39 // pred_region
        _
      $region44: #{downblock_forward.3} parent=39 // pred_fallthru
        _
      // Predicated region
      $region45: #{downblock_forward.3} parent=39 // pred_check
        %p706 = pneg %p173
      $region46: #{downblock_forward.3} parent=39 // pred_check_branch
        %708 = sbr.rel (%p706) target = $region48
      $region47: #{downblock_forward.3} parent=39 // pred_region
        _
      $region48: #{downblock_forward.3} parent=39 // pred_fallthru
        _
      // Predicated region
      $region49: #{downblock_forward.3} parent=39 // pred_check
        %p709 = pneg %p199
      $region50: #{downblock_forward.3} parent=39 // pred_check_branch
        %711 = sbr.rel (%p709) target = $region52
      $region51: #{downblock_forward.3} parent=39 // pred_region
        _
      $region52: #{downblock_forward.3} parent=39 // pred_fallthru
        _
    $region40: #{downblock_forward.3} parent=5 // pred_fallthru
      _
    %p712 = scmp.le.s32.totalorder 2, %s14
    // Predicated region
    $region53: #{downblock_forward.3} parent=5 // pred_check
      %p713 = pneg %p712
    $region54: #{downblock_forward.3} parent=5 // pred_check_branch
      %715 = sbr.rel (%p713) target = $region56
    $region55: #{downblock_forward.3} parent=5 // pred_region
      %s716 = ssub.s32 %s14, 2
      // Predicated region
      $region57: #{downblock_forward.3} parent=55 // pred_check
        %p717 = pneg %p153
      $region58: #{downblock_forward.3} parent=55 // pred_check_branch
        %719 = sbr.rel (%p717) target = $region60
      $region59: #{downblock_forward.3} parent=55 // pred_region
        %p720 = scmp.lt.s32.totalorder %s20, 1
        %s721 = scalar_select %p720, %s20, 1
        %s722 = smul.addr %s721, 4
        %s723 = smul.addr %s722, 8
        %s724 = scalar_lea.vmem %s5, %s723
      $region60: #{downblock_forward.3} parent=55 // pred_fallthru
        _
      // Predicated region
      $region61: #{downblock_forward.3} parent=55 // pred_check
        %p725 = pneg %p179
      $region62: #{downblock_forward.3} parent=55 // pred_check_branch
        %727 = sbr.rel (%p725) target = $region64
      $region63: #{downblock_forward.3} parent=55 // pred_region
        %p728 = scmp.lt.s32.totalorder %s20, 1
        %s729 = scalar_select %p728, %s20, 1
        %s730 = smul.addr %s729, 2
        %s731 = smul.addr %s730, 8
        %s732 = scalar_lea.vmem %s6, %s731
      $region64: #{downblock_forward.3} parent=55 // pred_fallthru
        _
      // Predicated region
      $region65: #{downblock_forward.3} parent=55 // pred_check
        %p733 = pneg %p205
      $region66: #{downblock_forward.3} parent=55 // pred_check_branch
        %735 = sbr.rel (%p733) target = $region68
      $region67: #{downblock_forward.3} parent=55 // pred_region
        %p736 = scmp.lt.s32.totalorder %s20, 1
        %s737 = scalar_select %p736, %s20, 1
        %s738 = smul.addr %s737, 2
        %s739 = smul.addr %s738, 8
        %s740 = scalar_lea.vmem %s7, %s739
      $region68: #{downblock_forward.3} parent=55 // pred_fallthru
        _
    $region56: #{downblock_forward.3} parent=5 // pred_fallthru
      _
  $region6: #{downblock_forward.3} parent=0 // loop_footer
    %s18 = sadd.s32 1, %s14
  $region7: #{downblock_forward.3} parent=0 // loop_footer_branch
    %13 = sbr.rel target = $region3
  $region8: #{downblock_forward.3} parent=0 // loop_exit
    _

</llo_original>
